<compile_context>
chip_gen: v6e
topology: v6e:2x2x1
jax: 0.10.0
libtpu: 0.0.40
codegen_flags: <defaults>
</compile_context>

<pallas_src>
import jax
import jax.numpy as jnp
import numpy as np
from jax.experimental import pallas as pl
from jax.experimental.pallas import tpu as pltpu


def lstm_kernel(xw_ref, params_ref, out_ref):
    """Full recurrence + output projection + log_softmax, transposed layout.

    xw_ref     : (T, 4H, B) f32  precomputed (emb[token] @ Wx + b)^T per step,
                                 gate order i|f|o|g stacked along sublanes.
    params_ref : (4H + 2*CP, H) f32 packed slab (B == H):
                   rows 0      : 4H      -> Wh^T          (4H, H)
                   rows 4H     : 4H+CP   -> Wp^T padded   (CP, H)  pad rows = 0
                   rows 4H+CP  : 4H+2CP  -> bias rows     (CP, B)  pad rows = -1e30
    out_ref    : (CP, B) f32  log-softmax, classes on sublanes (caller
                              slices to C and transposes).
    """
    T, H4, B = xw_ref.shape
    H = H4 // 4
    CP = out_ref.shape[0]

    wh_t = params_ref[0:H4, :]                    # (4H, H), loop-invariant
    wp_t = params_ref[H4:H4 + CP, :]              # (CP, H)
    bp_t = params_ref[H4 + CP:H4 + 2 * CP, :]     # (CP, B)

    h = jnp.zeros((H, B), jnp.float32)            # vreg-carried state (H, B)
    c = jnp.zeros((H, B), jnp.float32)

    # T is tiny and static: fully unrolled; h/c never round-trip through VMEM.
    for t in range(T):
        # One (4H,H)x(H,B) MXU matmul per step for all 4 gates.
        pre = xw_ref[t] + jnp.dot(wh_t, h, preferred_element_type=jnp.float32)  # (4H, B)

        # Gate slices are sublane slices at multiples of 8 -> aligned views.
        ifo = jax.nn.sigmoid(pre[0:3 * H, :])     # i | f | o
        g_g = jnp.tanh(pre[3 * H:, :])            # g
        i_g = ifo[0:H, :]
        f_g = ifo[H:2 * H, :]
        o_g = ifo[2 * H:3 * H, :]

        c = g_g * i_g + c * f_g
        h = jnp.tanh(c) * o_g

    # Output projection stays transposed: p^T = Wp^T @ h + b^T  -> (CP, B).
    # Pad class rows carry -1e30 bias so they contribute exp(.) == 0.
    p = jnp.dot(wp_t, h, preferred_element_type=jnp.float32) + bp_t
    m = jnp.max(p, axis=0, keepdims=True)
    s = jnp.sum(jnp.exp(p - m), axis=0, keepdims=True)
    out_ref[...] = p - (jnp.log(s) + m)


@jax.jit
def lstm_forward(x_ids, emb, wx, wh, b, wp, bp):
    """x_ids: (B, T, 1) int32 tokens in [0, 3)."""
    B, T, _ = x_ids.shape
    E, H = wx.shape[1], wx.shape[2]
    C = wp.shape[-1]
    assert B == H, "reference module requires batch_size == hidden_dim"
    CP = ((C + 7) // 8) * 8                                    # sublane-pad classes

    # ---- gate stacking (order i | f | o | g) ----
    wx_s = jnp.concatenate([wx[k] for k in range(4)], axis=1)  # (E, 4H)
    wh_s = jnp.concatenate([wh[k] for k in range(4)], axis=1)  # (H, 4H)
    b_s = jnp.concatenate([b[k] for k in range(4)], axis=1)    # (1, 4H)

    # ---- hoist the entire input contribution out of the kernel ----
    table = emb.astype(jnp.float32) @ wx_s + b_s               # (3, 4H)
    ids = x_ids[:, :, 0].astype(jnp.int32)                     # (B, T)
    xw = jnp.take(table, ids, axis=0)                          # (B, T, 4H)
    xw_t = jnp.transpose(xw, (1, 2, 0))                        # (T, 4H, B)

    # ---- pack all loop-invariant params into one slab (one DMA) ----
    wh_t = wh_s.T                                              # (4H, H)
    wp_t = jnp.zeros((CP, H), jnp.float32).at[:C, :].set(wp.T)
    bp_t = jnp.full((CP, B), -1e30, jnp.float32).at[:C, :].set(
        jnp.broadcast_to(bp.reshape(C, 1), (C, B)))
    params = jnp.concatenate([wh_t, wp_t, bp_t], axis=0)       # (4H + 2CP, H)

    vmem = pl.BlockSpec(memory_space=pltpu.MemorySpace.VMEM)
    out_t = pl.pallas_call(
        lstm_kernel,
        out_shape=jax.ShapeDtypeStruct((CP, B), jnp.float32),
        in_specs=[vmem, vmem],
        out_specs=vmem,
    )(xw_t, params)
    return out_t[:C, :].T                                      # (B, C)


def reference_forward(x_ids, emb, wx, wh, b, wp, bp):
    """Pure-JAX reference mirroring the PyTorch module (B == H required)."""
    B, T, _ = x_ids.shape
    H = wh.shape[-1]
    h = jnp.zeros((B, H), jnp.float32)
    c = jnp.zeros((B, H), jnp.float32)
    for t in range(T):
        x_t = emb[x_ids[:, t, 0]]
        pre = [x_t @ wx[k] + h @ wh[k] + b[k] for k in range(4)]
        i_g = jax.nn.sigmoid(pre[0])
        f_g = jax.nn.sigmoid(pre[1])
        o_g = jax.nn.sigmoid(pre[2])
        g_g = jnp.tanh(pre[3])
        c = g_g * i_g + c * f_g
        h = jnp.tanh(c) * o_g
    p = h @ wp + bp
    return jax.nn.log_softmax(p, axis=-1)


if __name__ == "__main__":
    # Small shapes consistent with the module.  batch_size must equal
    # hidden_dim (see note at top).
    B = 32          # batch_size
    H = 32          # hidden_dim (== B)
    T = 8           # seq_length
    E = 2           # embedding_dim
    C = 10          # num_classes
    VOCAB = 3

    key = jax.random.PRNGKey(0)
    k_emb, k_wx, k_wh, k_wp, k_x = jax.random.split(key, 5)

    # Deterministic parameter init (kaiming-style std; synthetic weights).
    emb = jax.random.normal(k_emb, (VOCAB, E), jnp.float32)
    # hx (MyLinear, bias=False): gain(sigmoid)=1 for i,f,o; gain(tanh)=5/3 for g.
    wx = jax.random.normal(k_wx, (4, E, H), jnp.float32) / jnp.sqrt(E)
    wx = wx.at[3].multiply(5.0 / 3.0)
    # hh (MyLinear, bias=True, nonlinearity='tanh'): gain = 5/3.
    wh = jax.random.normal(k_wh, (4, H, H), jnp.float32) * (5.0 / 3.0) / jnp.sqrt(H)
    b = jnp.zeros((4, 1, H), jnp.float32)
    # linear_p (nonlinearity='tanh').
    wp = jax.random.normal(k_wp, (H, C), jnp.float32) * (5.0 / 3.0) / jnp.sqrt(H)
    bp = jnp.zeros((1, C), jnp.float32)

    # Input tokens: (B, T, 1) ints in [0, 3), matching x[:, i, 0].long().
    x_ids = jax.random.randint(k_x, (B, T, 1), 0, VOCAB, dtype=jnp.int32)

    out = lstm_forward(x_ids, emb, wx, wh, b, wp, bp)
    out = jax.block_until_ready(out)

    ref = reference_forward(x_ids, emb, wx, wh, b, wp, bp)
    np.testing.assert_allclose(np.asarray(out), np.asarray(ref),
                               rtol=1e-3, atol=1e-3)

    print("KERNEL_OK")
</pallas_src>

<mosaic_0001>
module attributes {stable_mosaic.version = 11 : i64} {
  func.func @lstm_kernel(%arg0: memref<8x128x32xf32, #tpu.memory_space<vmem>>, %arg1: memref<160x32xf32, #tpu.memory_space<vmem>>, %arg2: memref<16x32xf32, #tpu.memory_space<vmem>>) attributes {dimension_semantics = [], scalar_prefetch = 0 : i64, scratch_operands = 0 : i64, tpu.core_type = #tpu.core_type<tc>} {
    %c0 = arith.constant 0 : index
    %c0_0 = arith.constant 0 : index
    %0 = vector.load %arg1[%c0, %c0_0] : memref<160x32xf32, #tpu.memory_space<vmem>>, vector<128x32xf32>
    %c128 = arith.constant 128 : index
    %c0_1 = arith.constant 0 : index
    %1 = vector.load %arg1[%c128, %c0_1] : memref<160x32xf32, #tpu.memory_space<vmem>>, vector<16x32xf32>
    %c144 = arith.constant 144 : index
    %c0_2 = arith.constant 0 : index
    %2 = vector.load %arg1[%c144, %c0_2] : memref<160x32xf32, #tpu.memory_space<vmem>>, vector<16x32xf32>
    %cst = arith.constant 0.000000e+00 : f32
    %3 = vector.broadcast %cst : f32 to vector<32x32xf32>
    %cst_3 = arith.constant 0.000000e+00 : f32
    %4 = vector.broadcast %cst_3 : f32 to vector<32x32xf32>
    %c0_4 = arith.constant 0 : index
    %c0_5 = arith.constant 0 : index
    %c0_6 = arith.constant 0 : index
    %5 = vector.load %arg0[%c0_4, %c0_5, %c0_6] : memref<8x128x32xf32, #tpu.memory_space<vmem>>, vector<1x128x32xf32>
    %6 = vector.shape_cast %5 : vector<1x128x32xf32> to vector<128x32xf32>
    %cst_7 = arith.constant dense<0.000000e+00> : vector<128x32xf32>
    %7 = tpu.matmul %0, %3, %cst_7 {dimension_numbers = #tpu.dot_dimension_numbers<[1], [0], [0], [1], [0, 0, 1, 1], [], []>} : vector<128x32xf32>, vector<32x32xf32>, vector<128x32xf32> -> vector<128x32xf32>
    %8 = arith.addf %6, %7 : vector<128x32xf32>
    %9 = vector.extract_strided_slice %8 {offsets = [0, 0], sizes = [96, 32], strides = [1, 1]} : vector<128x32xf32> to vector<96x32xf32>
    %10 = arith.negf %9 : vector<96x32xf32>
    %11 = math.exp %10 : vector<96x32xf32>
    %cst_8 = arith.constant 1.000000e+00 : f32
    %12 = vector.broadcast %cst_8 : f32 to vector<96x32xf32>
    %13 = arith.addf %12, %11 : vector<96x32xf32>
    %14 = arith.divf %12, %13 : vector<96x32xf32>
    %15 = vector.extract_strided_slice %8 {offsets = [96, 0], sizes = [32, 32], strides = [1, 1]} : vector<128x32xf32> to vector<32x32xf32>
    %16 = math.tanh %15 : vector<32x32xf32>
    %17 = vector.extract_strided_slice %14 {offsets = [0, 0], sizes = [32, 32], strides = [1, 1]} : vector<96x32xf32> to vector<32x32xf32>
    %18 = vector.extract_strided_slice %14 {offsets = [32, 0], sizes = [32, 32], strides = [1, 1]} : vector<96x32xf32> to vector<32x32xf32>
    %19 = vector.extract_strided_slice %14 {offsets = [64, 0], sizes = [32, 32], strides = [1, 1]} : vector<96x32xf32> to vector<32x32xf32>
    %20 = arith.mulf %16, %17 : vector<32x32xf32>
    %21 = arith.mulf %4, %18 : vector<32x32xf32>
    %22 = arith.addf %20, %21 : vector<32x32xf32>
    %23 = math.tanh %22 : vector<32x32xf32>
    %24 = arith.mulf %23, %19 : vector<32x32xf32>
    %c1 = arith.constant 1 : index
    %c0_9 = arith.constant 0 : index
    %c0_10 = arith.constant 0 : index
    %25 = vector.load %arg0[%c1, %c0_9, %c0_10] : memref<8x128x32xf32, #tpu.memory_space<vmem>>, vector<1x128x32xf32>
    %26 = vector.shape_cast %25 : vector<1x128x32xf32> to vector<128x32xf32>
    %cst_11 = arith.constant dense<0.000000e+00> : vector<128x32xf32>
    %27 = tpu.matmul %0, %24, %cst_11 {dimension_numbers = #tpu.dot_dimension_numbers<[1], [0], [0], [1], [0, 0, 1, 1], [], []>} : vector<128x32xf32>, vector<32x32xf32>, vector<128x32xf32> -> vector<128x32xf32>
    %28 = arith.addf %26, %27 : vector<128x32xf32>
    %29 = vector.extract_strided_slice %28 {offsets = [0, 0], sizes = [96, 32], strides = [1, 1]} : vector<128x32xf32> to vector<96x32xf32>
    %30 = arith.negf %29 : vector<96x32xf32>
    %31 = math.exp %30 : vector<96x32xf32>
    %cst_12 = arith.constant 1.000000e+00 : f32
    %32 = vector.broadcast %cst_12 : f32 to vector<96x32xf32>
    %33 = arith.addf %32, %31 : vector<96x32xf32>
    %34 = arith.divf %32, %33 : vector<96x32xf32>
    %35 = vector.extract_strided_slice %28 {offsets = [96, 0], sizes = [32, 32], strides = [1, 1]} : vector<128x32xf32> to vector<32x32xf32>
    %36 = math.tanh %35 : vector<32x32xf32>
    %37 = vector.extract_strided_slice %34 {offsets = [0, 0], sizes = [32, 32], strides = [1, 1]} : vector<96x32xf32> to vector<32x32xf32>
    %38 = vector.extract_strided_slice %34 {offsets = [32, 0], sizes = [32, 32], strides = [1, 1]} : vector<96x32xf32> to vector<32x32xf32>
    %39 = vector.extract_strided_slice %34 {offsets = [64, 0], sizes = [32, 32], strides = [1, 1]} : vector<96x32xf32> to vector<32x32xf32>
    %40 = arith.mulf %36, %37 : vector<32x32xf32>
    %41 = arith.mulf %22, %38 : vector<32x32xf32>
    %42 = arith.addf %40, %41 : vector<32x32xf32>
    %43 = math.tanh %42 : vector<32x32xf32>
    %44 = arith.mulf %43, %39 : vector<32x32xf32>
    %c2 = arith.constant 2 : index
    %c0_13 = arith.constant 0 : index
    %c0_14 = arith.constant 0 : index
    %45 = vector.load %arg0[%c2, %c0_13, %c0_14] : memref<8x128x32xf32, #tpu.memory_space<vmem>>, vector<1x128x32xf32>
    %46 = vector.shape_cast %45 : vector<1x128x32xf32> to vector<128x32xf32>
    %cst_15 = arith.constant dense<0.000000e+00> : vector<128x32xf32>
    %47 = tpu.matmul %0, %44, %cst_15 {dimension_numbers = #tpu.dot_dimension_numbers<[1], [0], [0], [1], [0, 0, 1, 1], [], []>} : vector<128x32xf32>, vector<32x32xf32>, vector<128x32xf32> -> vector<128x32xf32>
    %48 = arith.addf %46, %47 : vector<128x32xf32>
    %49 = vector.extract_strided_slice %48 {offsets = [0, 0], sizes = [96, 32], strides = [1, 1]} : vector<128x32xf32> to vector<96x32xf32>
    %50 = arith.negf %49 : vector<96x32xf32>
    %51 = math.exp %50 : vector<96x32xf32>
    %cst_16 = arith.constant 1.000000e+00 : f32
    %52 = vector.broadcast %cst_16 : f32 to vector<96x32xf32>
    %53 = arith.addf %52, %51 : vector<96x32xf32>
    %54 = arith.divf %52, %53 : vector<96x32xf32>
    %55 = vector.extract_strided_slice %48 {offsets = [96, 0], sizes = [32, 32], strides = [1, 1]} : vector<128x32xf32> to vector<32x32xf32>
    %56 = math.tanh %55 : vector<32x32xf32>
    %57 = vector.extract_strided_slice %54 {offsets = [0, 0], sizes = [32, 32], strides = [1, 1]} : vector<96x32xf32> to vector<32x32xf32>
    %58 = vector.extract_strided_slice %54 {offsets = [32, 0], sizes = [32, 32], strides = [1, 1]} : vector<96x32xf32> to vector<32x32xf32>
    %59 = vector.extract_strided_slice %54 {offsets = [64, 0], sizes = [32, 32], strides = [1, 1]} : vector<96x32xf32> to vector<32x32xf32>
    %60 = arith.mulf %56, %57 : vector<32x32xf32>
    %61 = arith.mulf %42, %58 : vector<32x32xf32>
    %62 = arith.addf %60, %61 : vector<32x32xf32>
    %63 = math.tanh %62 : vector<32x32xf32>
    %64 = arith.mulf %63, %59 : vector<32x32xf32>
    %c3 = arith.constant 3 : index
    %c0_17 = arith.constant 0 : index
    %c0_18 = arith.constant 0 : index
    %65 = vector.load %arg0[%c3, %c0_17, %c0_18] : memref<8x128x32xf32, #tpu.memory_space<vmem>>, vector<1x128x32xf32>
    %66 = vector.shape_cast %65 : vector<1x128x32xf32> to vector<128x32xf32>
    %cst_19 = arith.constant dense<0.000000e+00> : vector<128x32xf32>
    %67 = tpu.matmul %0, %64, %cst_19 {dimension_numbers = #tpu.dot_dimension_numbers<[1], [0], [0], [1], [0, 0, 1, 1], [], []>} : vector<128x32xf32>, vector<32x32xf32>, vector<128x32xf32> -> vector<128x32xf32>
    %68 = arith.addf %66, %67 : vector<128x32xf32>
    %69 = vector.extract_strided_slice %68 {offsets = [0, 0], sizes = [96, 32], strides = [1, 1]} : vector<128x32xf32> to vector<96x32xf32>
    %70 = arith.negf %69 : vector<96x32xf32>
    %71 = math.exp %70 : vector<96x32xf32>
    %cst_20 = arith.constant 1.000000e+00 : f32
    %72 = vector.broadcast %cst_20 : f32 to vector<96x32xf32>
    %73 = arith.addf %72, %71 : vector<96x32xf32>
    %74 = arith.divf %72, %73 : vector<96x32xf32>
    %75 = vector.extract_strided_slice %68 {offsets = [96, 0], sizes = [32, 32], strides = [1, 1]} : vector<128x32xf32> to vector<32x32xf32>
    %76 = math.tanh %75 : vector<32x32xf32>
    %77 = vector.extract_strided_slice %74 {offsets = [0, 0], sizes = [32, 32], strides = [1, 1]} : vector<96x32xf32> to vector<32x32xf32>
    %78 = vector.extract_strided_slice %74 {offsets = [32, 0], sizes = [32, 32], strides = [1, 1]} : vector<96x32xf32> to vector<32x32xf32>
    %79 = vector.extract_strided_slice %74 {offsets = [64, 0], sizes = [32, 32], strides = [1, 1]} : vector<96x32xf32> to vector<32x32xf32>
    %80 = arith.mulf %76, %77 : vector<32x32xf32>
    %81 = arith.mulf %62, %78 : vector<32x32xf32>
    %82 = arith.addf %80, %81 : vector<32x32xf32>
    %83 = math.tanh %82 : vector<32x32xf32>
    %84 = arith.mulf %83, %79 : vector<32x32xf32>
    %c4 = arith.constant 4 : index
    %c0_21 = arith.constant 0 : index
    %c0_22 = arith.constant 0 : index
    %85 = vector.load %arg0[%c4, %c0_21, %c0_22] : memref<8x128x32xf32, #tpu.memory_space<vmem>>, vector<1x128x32xf32>
    %86 = vector.shape_cast %85 : vector<1x128x32xf32> to vector<128x32xf32>
    %cst_23 = arith.constant dense<0.000000e+00> : vector<128x32xf32>
    %87 = tpu.matmul %0, %84, %cst_23 {dimension_numbers = #tpu.dot_dimension_numbers<[1], [0], [0], [1], [0, 0, 1, 1], [], []>} : vector<128x32xf32>, vector<32x32xf32>, vector<128x32xf32> -> vector<128x32xf32>
    %88 = arith.addf %86, %87 : vector<128x32xf32>
    %89 = vector.extract_strided_slice %88 {offsets = [0, 0], sizes = [96, 32], strides = [1, 1]} : vector<128x32xf32> to vector<96x32xf32>
    %90 = arith.negf %89 : vector<96x32xf32>
    %91 = math.exp %90 : vector<96x32xf32>
    %cst_24 = arith.constant 1.000000e+00 : f32
    %92 = vector.broadcast %cst_24 : f32 to vector<96x32xf32>
    %93 = arith.addf %92, %91 : vector<96x32xf32>
    %94 = arith.divf %92, %93 : vector<96x32xf32>
    %95 = vector.extract_strided_slice %88 {offsets = [96, 0], sizes = [32, 32], strides = [1, 1]} : vector<128x32xf32> to vector<32x32xf32>
    %96 = math.tanh %95 : vector<32x32xf32>
    %97 = vector.extract_strided_slice %94 {offsets = [0, 0], sizes = [32, 32], strides = [1, 1]} : vector<96x32xf32> to vector<32x32xf32>
    %98 = vector.extract_strided_slice %94 {offsets = [32, 0], sizes = [32, 32], strides = [1, 1]} : vector<96x32xf32> to vector<32x32xf32>
    %99 = vector.extract_strided_slice %94 {offsets = [64, 0], sizes = [32, 32], strides = [1, 1]} : vector<96x32xf32> to vector<32x32xf32>
    %100 = arith.mulf %96, %97 : vector<32x32xf32>
    %101 = arith.mulf %82, %98 : vector<32x32xf32>
    %102 = arith.addf %100, %101 : vector<32x32xf32>
    %103 = math.tanh %102 : vector<32x32xf32>
    %104 = arith.mulf %103, %99 : vector<32x32xf32>
    %c5 = arith.constant 5 : index
    %c0_25 = arith.constant 0 : index
    %c0_26 = arith.constant 0 : index
    %105 = vector.load %arg0[%c5, %c0_25, %c0_26] : memref<8x128x32xf32, #tpu.memory_space<vmem>>, vector<1x128x32xf32>
    %106 = vector.shape_cast %105 : vector<1x128x32xf32> to vector<128x32xf32>
    %cst_27 = arith.constant dense<0.000000e+00> : vector<128x32xf32>
    %107 = tpu.matmul %0, %104, %cst_27 {dimension_numbers = #tpu.dot_dimension_numbers<[1], [0], [0], [1], [0, 0, 1, 1], [], []>} : vector<128x32xf32>, vector<32x32xf32>, vector<128x32xf32> -> vector<128x32xf32>
    %108 = arith.addf %106, %107 : vector<128x32xf32>
    %109 = vector.extract_strided_slice %108 {offsets = [0, 0], sizes = [96, 32], strides = [1, 1]} : vector<128x32xf32> to vector<96x32xf32>
    %110 = arith.negf %109 : vector<96x32xf32>
    %111 = math.exp %110 : vector<96x32xf32>
    %cst_28 = arith.constant 1.000000e+00 : f32
    %112 = vector.broadcast %cst_28 : f32 to vector<96x32xf32>
    %113 = arith.addf %112, %111 : vector<96x32xf32>
    %114 = arith.divf %112, %113 : vector<96x32xf32>
    %115 = vector.extract_strided_slice %108 {offsets = [96, 0], sizes = [32, 32], strides = [1, 1]} : vector<128x32xf32> to vector<32x32xf32>
    %116 = math.tanh %115 : vector<32x32xf32>
    %117 = vector.extract_strided_slice %114 {offsets = [0, 0], sizes = [32, 32], strides = [1, 1]} : vector<96x32xf32> to vector<32x32xf32>
    %118 = vector.extract_strided_slice %114 {offsets = [32, 0], sizes = [32, 32], strides = [1, 1]} : vector<96x32xf32> to vector<32x32xf32>
    %119 = vector.extract_strided_slice %114 {offsets = [64, 0], sizes = [32, 32], strides = [1, 1]} : vector<96x32xf32> to vector<32x32xf32>
    %120 = arith.mulf %116, %117 : vector<32x32xf32>
    %121 = arith.mulf %102, %118 : vector<32x32xf32>
    %122 = arith.addf %120, %121 : vector<32x32xf32>
    %123 = math.tanh %122 : vector<32x32xf32>
    %124 = arith.mulf %123, %119 : vector<32x32xf32>
    %c6 = arith.constant 6 : index
    %c0_29 = arith.constant 0 : index
    %c0_30 = arith.constant 0 : index
    %125 = vector.load %arg0[%c6, %c0_29, %c0_30] : memref<8x128x32xf32, #tpu.memory_space<vmem>>, vector<1x128x32xf32>
    %126 = vector.shape_cast %125 : vector<1x128x32xf32> to vector<128x32xf32>
    %cst_31 = arith.constant dense<0.000000e+00> : vector<128x32xf32>
    %127 = tpu.matmul %0, %124, %cst_31 {dimension_numbers = #tpu.dot_dimension_numbers<[1], [0], [0], [1], [0, 0, 1, 1], [], []>} : vector<128x32xf32>, vector<32x32xf32>, vector<128x32xf32> -> vector<128x32xf32>
    %128 = arith.addf %126, %127 : vector<128x32xf32>
    %129 = vector.extract_strided_slice %128 {offsets = [0, 0], sizes = [96, 32], strides = [1, 1]} : vector<128x32xf32> to vector<96x32xf32>
    %130 = arith.negf %129 : vector<96x32xf32>
    %131 = math.exp %130 : vector<96x32xf32>
    %cst_32 = arith.constant 1.000000e+00 : f32
    %132 = vector.broadcast %cst_32 : f32 to vector<96x32xf32>
    %133 = arith.addf %132, %131 : vector<96x32xf32>
    %134 = arith.divf %132, %133 : vector<96x32xf32>
    %135 = vector.extract_strided_slice %128 {offsets = [96, 0], sizes = [32, 32], strides = [1, 1]} : vector<128x32xf32> to vector<32x32xf32>
    %136 = math.tanh %135 : vector<32x32xf32>
    %137 = vector.extract_strided_slice %134 {offsets = [0, 0], sizes = [32, 32], strides = [1, 1]} : vector<96x32xf32> to vector<32x32xf32>
    %138 = vector.extract_strided_slice %134 {offsets = [32, 0], sizes = [32, 32], strides = [1, 1]} : vector<96x32xf32> to vector<32x32xf32>
    %139 = vector.extract_strided_slice %134 {offsets = [64, 0], sizes = [32, 32], strides = [1, 1]} : vector<96x32xf32> to vector<32x32xf32>
    %140 = arith.mulf %136, %137 : vector<32x32xf32>
    %141 = arith.mulf %122, %138 : vector<32x32xf32>
    %142 = arith.addf %140, %141 : vector<32x32xf32>
    %143 = math.tanh %142 : vector<32x32xf32>
    %144 = arith.mulf %143, %139 : vector<32x32xf32>
    %c7 = arith.constant 7 : index
    %c0_33 = arith.constant 0 : index
    %c0_34 = arith.constant 0 : index
    %145 = vector.load %arg0[%c7, %c0_33, %c0_34] : memref<8x128x32xf32, #tpu.memory_space<vmem>>, vector<1x128x32xf32>
    %146 = vector.shape_cast %145 : vector<1x128x32xf32> to vector<128x32xf32>
    %cst_35 = arith.constant dense<0.000000e+00> : vector<128x32xf32>
    %147 = tpu.matmul %0, %144, %cst_35 {dimension_numbers = #tpu.dot_dimension_numbers<[1], [0], [0], [1], [0, 0, 1, 1], [], []>} : vector<128x32xf32>, vector<32x32xf32>, vector<128x32xf32> -> vector<128x32xf32>
    %148 = arith.addf %146, %147 : vector<128x32xf32>
    %149 = vector.extract_strided_slice %148 {offsets = [0, 0], sizes = [96, 32], strides = [1, 1]} : vector<128x32xf32> to vector<96x32xf32>
    %150 = arith.negf %149 : vector<96x32xf32>
    %151 = math.exp %150 : vector<96x32xf32>
    %cst_36 = arith.constant 1.000000e+00 : f32
    %152 = vector.broadcast %cst_36 : f32 to vector<96x32xf32>
    %153 = arith.addf %152, %151 : vector<96x32xf32>
    %154 = arith.divf %152, %153 : vector<96x32xf32>
    %155 = vector.extract_strided_slice %148 {offsets = [96, 0], sizes = [32, 32], strides = [1, 1]} : vector<128x32xf32> to vector<32x32xf32>
    %156 = math.tanh %155 : vector<32x32xf32>
    %157 = vector.extract_strided_slice %154 {offsets = [0, 0], sizes = [32, 32], strides = [1, 1]} : vector<96x32xf32> to vector<32x32xf32>
    %158 = vector.extract_strided_slice %154 {offsets = [32, 0], sizes = [32, 32], strides = [1, 1]} : vector<96x32xf32> to vector<32x32xf32>
    %159 = vector.extract_strided_slice %154 {offsets = [64, 0], sizes = [32, 32], strides = [1, 1]} : vector<96x32xf32> to vector<32x32xf32>
    %160 = arith.mulf %156, %157 : vector<32x32xf32>
    %161 = arith.mulf %142, %158 : vector<32x32xf32>
    %162 = arith.addf %160, %161 : vector<32x32xf32>
    %163 = math.tanh %162 : vector<32x32xf32>
    %164 = arith.mulf %163, %159 : vector<32x32xf32>
    %cst_37 = arith.constant dense<0.000000e+00> : vector<16x32xf32>
    %165 = tpu.matmul %1, %164, %cst_37 {dimension_numbers = #tpu.dot_dimension_numbers<[1], [0], [0], [1], [0, 0, 1, 1], [], []>} : vector<16x32xf32>, vector<32x32xf32>, vector<16x32xf32> -> vector<16x32xf32>
    %166 = arith.addf %165, %2 : vector<16x32xf32>
    %cst_38 = arith.constant dense<0xFF800000> : vector<32xf32>
    %167 = vector.multi_reduction <maximumf>, %166, %cst_38 [0] : vector<16x32xf32> to vector<32xf32>
    %168 = vector.shape_cast %167 : vector<32xf32> to vector<1x32xf32>
    %169 = vector.broadcast %168 : vector<1x32xf32> to vector<16x32xf32>
    %170 = arith.subf %166, %169 : vector<16x32xf32>
    %171 = math.exp %170 : vector<16x32xf32>
    %cst_39 = arith.constant dense<0.000000e+00> : vector<32xf32>
    %172 = vector.multi_reduction <add>, %171, %cst_39 [0] : vector<16x32xf32> to vector<32xf32>
    %173 = vector.shape_cast %172 : vector<32xf32> to vector<1x32xf32>
    %174 = math.log %173 : vector<1x32xf32>
    %175 = arith.addf %174, %168 : vector<1x32xf32>
    %176 = vector.broadcast %175 : vector<1x32xf32> to vector<16x32xf32>
    %177 = arith.subf %166, %176 : vector<16x32xf32>
    %c0_40 = arith.constant 0 : index
    %c0_41 = arith.constant 0 : index
    %178 = vector.load %arg2[%c0_40, %c0_41] : memref<16x32xf32, #tpu.memory_space<vmem>>, vector<16x32xf32>
    tpu.vector_store %arg2[%c0_40, %c0_41], %177 {strides = array<i32>} : memref<16x32xf32, #tpu.memory_space<vmem>>, vector<16x32xf32>,
    return
  }
}

</mosaic_0001>

<llo_original>
// kernel: lstm_forward.1
$region0: #{lstm_forward.1}
  #allocation0 [shape = 'u32[]', space=smem, size = 0x4, offset = 0x4, fixed_abs, tag = 'smem constant byte address 0x4 - core index']
  #allocation1 [shape = 'u32[144,128]{1,0:T(1,128)}', space=vmem, size = 0x12000, scoped, tag = 'internal scratch']
  %s0 = inlined_call_operand.vmem [shape: f32[8,128,32], index: 0, kind: input, shape index: {}]
  %s1 = inlined_call_operand.vmem [shape: f32[160,32], index: 1, kind: input, shape index: {}]
  %s2 = inlined_call_operand.vmem [shape: f32[16,32], index: 2, kind: output, shape index: {}]
  %s3 = sld [smem:[#allocation0]]
  $region18: #{lstm_forward.1} parent=0
    _
  %s5 = ssub.s32 1, %s3
  %s6 = scalar_select 0, %s5, %s3
  // Predicated region
  $region2: #{lstm_forward.1} parent=0 // pred_check
    _
  $region3: #{lstm_forward.1} parent=0 // pred_check_branch
    %8 = sbr.rel (0) target = $region5
  $region4: #{lstm_forward.1} parent=0 // pred_region
    _
  $region5: #{lstm_forward.1} parent=0 // pred_fallthru
    _
  // Predicated region
  $region6: #{lstm_forward.1} parent=0 // pred_check
    _
  $region7: #{lstm_forward.1} parent=0 // pred_check_branch
    %10 = sbr.rel (0) target = $region9
  $region8: #{lstm_forward.1} parent=0 // pred_region
    _
  $region9: #{lstm_forward.1} parent=0 // pred_fallthru
    _
  %v11 = vld [vmem:[%s1] sm:$0xff]
  %v12 = vld [vmem:[%s1 + $0x8] sm:$0xff]
  %v13 = vld [vmem:[%s1 + $0x10] sm:$0xff]
  %v14 = vld [vmem:[%s1 + $0x18] sm:$0xff]
  %v15 = vld [vmem:[%s1 + $0x20] sm:$0xff]
  %v16 = vld [vmem:[%s1 + $0x28] sm:$0xff]
  %v17 = vld [vmem:[%s1 + $0x30] sm:$0xff]
  %v18 = vld [vmem:[%s1 + $0x38] sm:$0xff]
  %v19 = vld [vmem:[%s1 + $0x40] sm:$0xff]
  %v20 = vld [vmem:[%s1 + $0x48] sm:$0xff]
  %v21 = vld [vmem:[%s1 + $0x50] sm:$0xff]
  %v22 = vld [vmem:[%s1 + $0x58] sm:$0xff]
  %v23 = vld [vmem:[%s1 + $0x60] sm:$0xff]
  %v24 = vld [vmem:[%s1 + $0x68] sm:$0xff]
  %v25 = vld [vmem:[%s1 + $0x70] sm:$0xff]
  %v26 = vld [vmem:[%s1 + $0x78] sm:$0xff]
  %v27 = vld [vmem:[%s1 + $0x80] sm:$0xff]
  %v28 = vld [vmem:[%s1 + $0x88] sm:$0xff]
  %v29 = vld [vmem:[%s1 + $0x90] sm:$0xff]
  %v30 = vld [vmem:[%s1 + $0x98] sm:$0xff]
  %v31 = vld [vmem:[%s0] sm:$0xff]
  %v32 = vld [vmem:[%s0 + $0x8] sm:$0xff]
  %v33 = vld [vmem:[%s0 + $0x10] sm:$0xff]
  %v34 = vld [vmem:[%s0 + $0x18] sm:$0xff]
  %v35 = vld [vmem:[%s0 + $0x20] sm:$0xff]
  %v36 = vld [vmem:[%s0 + $0x28] sm:$0xff]
  %v37 = vld [vmem:[%s0 + $0x30] sm:$0xff]
  %v38 = vld [vmem:[%s0 + $0x38] sm:$0xff]
  %v39 = vld [vmem:[%s0 + $0x40] sm:$0xff]
  %v40 = vld [vmem:[%s0 + $0x48] sm:$0xff]
  %v41 = vld [vmem:[%s0 + $0x50] sm:$0xff]
  %v42 = vld [vmem:[%s0 + $0x58] sm:$0xff]
  %v43 = vld [vmem:[%s0 + $0x60] sm:$0xff]
  %v44 = vld [vmem:[%s0 + $0x68] sm:$0xff]
  %v45 = vld [vmem:[%s0 + $0x70] sm:$0xff]
  %v46 = vld [vmem:[%s0 + $0x78] sm:$0xff]
  %vm47 = vcmask 261120
  %v49 = vsel %vm47, %v11, 0
  %v52 = vsel %vm47, %v12, 0
  %v55 = vsel %vm47, %v13, 0
  %v58 = vsel %vm47, %v14, 0
  %v61 = vsel %vm47, %v15, 0
  %v64 = vsel %vm47, %v16, 0
  %v67 = vsel %vm47, %v17, 0
  %v70 = vsel %vm47, %v18, 0
  %v73 = vsel %vm47, %v19, 0
  %v76 = vsel %vm47, %v20, 0
  %v79 = vsel %vm47, %v21, 0
  %v82 = vsel %vm47, %v22, 0
  %v85 = vsel %vm47, %v23, 0
  %v88 = vsel %vm47, %v24, 0
  %v91 = vsel %vm47, %v25, 0
  %v94 = vsel %vm47, %v26, 0
  %96 = vmatprep.subr.mxu0 0.0
  %97 = vmatpush1.msra.mxu0 0.0
  %98 = vmatprep.subr.mxu0 0.0
  %99 = vmatpush1.msra.mxu0 0.0
  %100 = vmatprep.subr.mxu0 0.0
  %101 = vmatpush1.msra.mxu0 0.0
  %102 = vmatprep.subr.mxu0 0.0
  %103 = vmatpush1.msra.mxu0 0.0
  %104 = vmatprep.subr.mxu0 0.0
  %105 = vmatpush1.msra.mxu0 0.0
  %106 = vmatprep.subr.mxu0 0.0
  %107 = vmatpush1.msra.mxu0 0.0
  %108 = vmatprep.subr.mxu0 0.0
  %109 = vmatpush1.msra.mxu0 0.0
  %110 = vmatprep.subr.mxu0 0.0
  %111 = vmatpush1.msra.mxu0 0.0
  %112 = vmatprep.subr.mxu0 0.0
  %113 = vmatpush1.msra.mxu0 0.0
  %114 = vmatprep.subr.mxu0 0.0
  %115 = vmatpush1.msra.mxu0 0.0
  %116 = vmatprep.subr.mxu0 0.0
  %117 = vmatpush1.msra.mxu0 0.0
  %118 = vmatprep.subr.mxu0 0.0
  %119 = vmatpush1.msra.mxu0 0.0
  %120 = vmatprep.subr.mxu0 0.0
  %121 = vmatpush1.msra.mxu0 0.0
  %122 = vmatprep.subr.mxu0 0.0
  %123 = vmatpush1.msra.mxu0 0.0
  %124 = vmatprep.subr.mxu0 0.0
  %125 = vmatpush1.msra.mxu0 0.0
  %126 = vmatprep.subr.mxu0 0.0
  %127 = vmatpush1.msra.mxu0 0.0
  %128 = vmatprep.subr.mxu0 0.0
  %129 = vmatpush2.msra.mxu0 0.0
  %130 = vmatprep.subr.mxu0 0.0
  %131 = vmatpush2.msra.mxu0 0.0
  %132 = vmatprep.subr.mxu0 0.0
  %133 = vmatpush2.msra.mxu0 0.0
  %134 = vmatprep.subr.mxu0 0.0
  %135 = vmatpush2.msra.mxu0 0.0
  %136 = vmatprep.subr.mxu0 0.0
  %137 = vmatpush2.msra.mxu0 0.0
  %138 = vmatprep.subr.mxu0 0.0
  %139 = vmatpush2.msra.mxu0 0.0
  %140 = vmatprep.subr.mxu0 0.0
  %141 = vmatpush2.msra.mxu0 0.0
  %142 = vmatprep.subr.mxu0 0.0
  %143 = vmatpush2.msra.mxu0 0.0
  %144 = vmatprep.subr.mxu0 0.0
  %145 = vmatpush2.msra.mxu0 0.0
  %146 = vmatprep.subr.mxu0 0.0
  %147 = vmatpush2.msra.mxu0 0.0
  %148 = vmatprep.subr.mxu0 0.0
  %149 = vmatpush2.msra.mxu0 0.0
  %150 = vmatprep.subr.mxu0 0.0
  %151 = vmatpush2.msra.mxu0 0.0
  %152 = vmatprep.subr.mxu0 0.0
  %153 = vmatpush2.msra.mxu0 0.0
  %154 = vmatprep.subr.mxu0 0.0
  %155 = vmatpush2.msra.mxu0 0.0
  %156 = vmatprep.subr.mxu0 0.0
  %157 = vmatpush2.msra.mxu0 0.0
  %158 = vmatprep.subr.mxu0 0.0
  %159 = vmatpush2.msra.mxu0 0.0
  %160 = vmatprep.mubr.f32.mxu0 0.0
  %161 = vmatmul.mubr.f32.gmra.mxu0 %v49
  %v162 = vpop.f32.mrf.mxu0
  %v163 = vadd.f32 0.0, %v162
  %v164 = vpop.f32.mrf.mxu0
  %165 = vmatprep.mubr.f32.mxu0 0.0
  %166 = vmatmul.mubr.f32.gmra.mxu0 %v52
  %v167 = vpop.f32.mrf.mxu0
  %v168 = vadd.f32 0.0, %v167
  %v169 = vpop.f32.mrf.mxu0
  %170 = vmatprep.mubr.f32.mxu0 0.0
  %171 = vmatmul.mubr.f32.gmra.mxu0 %v55
  %v172 = vpop.f32.mrf.mxu0
  %v173 = vadd.f32 0.0, %v172
  %v174 = vpop.f32.mrf.mxu0
  %175 = vmatprep.mubr.f32.mxu0 0.0
  %176 = vmatmul.mubr.f32.gmra.mxu0 %v58
  %v177 = vpop.f32.mrf.mxu0
  %v178 = vadd.f32 0.0, %v177
  %v179 = vpop.f32.mrf.mxu0
  %180 = vmatprep.mubr.f32.mxu0 0.0
  %181 = vmatmul.mubr.f32.gmra.mxu0 %v61
  %v182 = vpop.f32.mrf.mxu0
  %v183 = vadd.f32 0.0, %v182
  %v184 = vpop.f32.mrf.mxu0
  %185 = vmatprep.mubr.f32.mxu0 0.0
  %186 = vmatmul.mubr.f32.gmra.mxu0 %v64
  %v187 = vpop.f32.mrf.mxu0
  %v188 = vadd.f32 0.0, %v187
  %v189 = vpop.f32.mrf.mxu0
  %190 = vmatprep.mubr.f32.mxu0 0.0
  %191 = vmatmul.mubr.f32.gmra.mxu0 %v67
  %v192 = vpop.f32.mrf.mxu0
  %v193 = vadd.f32 0.0, %v192
  %v194 = vpop.f32.mrf.mxu0
  %195 = vmatprep.mubr.f32.mxu0 0.0
  %196 = vmatmul.mubr.f32.gmra.mxu0 %v70
  %v197 = vpop.f32.mrf.mxu0
  %v198 = vadd.f32 0.0, %v197
  %v199 = vpop.f32.mrf.mxu0
  %200 = vmatprep.mubr.f32.mxu0 0.0
  %201 = vmatmul.mubr.f32.gmra.mxu0 %v73
  %v202 = vpop.f32.mrf.mxu0
  %v203 = vadd.f32 0.0, %v202
  %v204 = vpop.f32.mrf.mxu0
  %205 = vmatprep.mubr.f32.mxu0 0.0
  %206 = vmatmul.mubr.f32.gmra.mxu0 %v76
  %v207 = vpop.f32.mrf.mxu0
  %v208 = vadd.f32 0.0, %v207
  %v209 = vpop.f32.mrf.mxu0
  %210 = vmatprep.mubr.f32.mxu0 0.0
  %211 = vmatmul.mubr.f32.gmra.mxu0 %v79
  %v212 = vpop.f32.mrf.mxu0
  %v213 = vadd.f32 0.0, %v212
  %v214 = vpop.f32.mrf.mxu0
  %215 = vmatprep.mubr.f32.mxu0 0.0
  %216 = vmatmul.mubr.f32.gmra.mxu0 %v82
  %v217 = vpop.f32.mrf.mxu0
  %v218 = vadd.f32 0.0, %v217
  %v219 = vpop.f32.mrf.mxu0
  %220 = vmatprep.mubr.f32.mxu0 0.0
  %221 = vmatmul.mubr.f32.gmra.mxu0 %v85
  %v222 = vpop.f32.mrf.mxu0
  %v223 = vadd.f32 0.0, %v222
  %v224 = vpop.f32.mrf.mxu0
  %225 = vmatprep.mubr.f32.mxu0 0.0
  %226 = vmatmul.mubr.f32.gmra.mxu0 %v88
  %v227 = vpop.f32.mrf.mxu0
  %v228 = vadd.f32 0.0, %v227
  %v229 = vpop.f32.mrf.mxu0
  %230 = vmatprep.mubr.f32.mxu0 0.0
  %231 = vmatmul.mubr.f32.gmra.mxu0 %v91
  %v232 = vpop.f32.mrf.mxu0
  %v233 = vadd.f32 0.0, %v232
  %v234 = vpop.f32.mrf.mxu0
  %235 = vmatprep.mubr.f32.mxu0 0.0
  %236 = vmatmul.mubr.f32.gmra.mxu0 %v94
  %v237 = vpop.f32.mrf.mxu0
  %v238 = vadd.f32 0.0, %v237
  %v239 = vpop.f32.mrf.mxu0
  %240 = vdwg.mxu0
  %v241 = vadd.f32 %v31, %v163
  %v242 = vadd.f32 %v32, %v168
  %v243 = vadd.f32 %v33, %v173
  %v244 = vadd.f32 %v34, %v178
  %v245 = vadd.f32 %v35, %v183
  %v246 = vadd.f32 %v36, %v188
  %v247 = vadd.f32 %v37, %v193
  %v248 = vadd.f32 %v38, %v198
  %v249 = vadd.f32 %v39, %v203
  %v250 = vadd.f32 %v40, %v208
  %v251 = vadd.f32 %v41, %v213
  %v252 = vadd.f32 %v42, %v218
  %v253 = vadd.f32 %v43, %v223
  %v254 = vadd.f32 %v44, %v228
  %v255 = vadd.f32 %v45, %v233
  %v256 = vadd.f32 %v46, %v238
  %v257 = vxor.u32 %v241, 2147483648
  %v258 = vxor.u32 %v242, 2147483648
  %v259 = vxor.u32 %v243, 2147483648
  %v260 = vxor.u32 %v244, 2147483648
  %v261 = vxor.u32 %v245, 2147483648
  %v262 = vxor.u32 %v246, 2147483648
  %v263 = vxor.u32 %v247, 2147483648
  %v264 = vxor.u32 %v248, 2147483648
  %v265 = vxor.u32 %v249, 2147483648
  %v266 = vxor.u32 %v250, 2147483648
  %v267 = vxor.u32 %v251, 2147483648
  %v268 = vxor.u32 %v252, 2147483648
  %v269 = vmul.f32 %v257, 1.442695
  %v270 = vpow.pop %v269
  %v271 = vmul.f32 %v258, 1.442695
  %v272 = vpow.pop %v271
  %v273 = vmul.f32 %v259, 1.442695
  %v274 = vpow.pop %v273
  %v275 = vmul.f32 %v260, 1.442695
  %v276 = vpow.pop %v275
  %v277 = vmul.f32 %v261, 1.442695
  %v278 = vpow.pop %v277
  %v279 = vmul.f32 %v262, 1.442695
  %v280 = vpow.pop %v279
  %v281 = vmul.f32 %v263, 1.442695
  %v282 = vpow.pop %v281
  %v283 = vmul.f32 %v264, 1.442695
  %v284 = vpow.pop %v283
  %v285 = vmul.f32 %v265, 1.442695
  %v286 = vpow.pop %v285
  %v287 = vmul.f32 %v266, 1.442695
  %v288 = vpow.pop %v287
  %v289 = vmul.f32 %v267, 1.442695
  %v290 = vpow.pop %v289
  %v291 = vmul.f32 %v268, 1.442695
  %v292 = vpow.pop %v291
  %v293 = vadd.f32 %v270, 1.0
  %v294 = vadd.f32 %v272, 1.0
  %v295 = vadd.f32 %v274, 1.0
  %v296 = vadd.f32 %v276, 1.0
  %v297 = vadd.f32 %v278, 1.0
  %v298 = vadd.f32 %v280, 1.0
  %v299 = vadd.f32 %v282, 1.0
  %v300 = vadd.f32 %v284, 1.0
  %v301 = vadd.f32 %v286, 1.0
  %v302 = vadd.f32 %v288, 1.0
  %v303 = vadd.f32 %v290, 1.0
  %v304 = vadd.f32 %v292, 1.0
  %v305 = vrcp.pop %v293
  %v306 = vmul.f32 1.0, %v305
  %v307 = vrcp.pop %v294
  %v308 = vmul.f32 1.0, %v307
  %v309 = vrcp.pop %v295
  %v310 = vmul.f32 1.0, %v309
  %v311 = vrcp.pop %v296
  %v312 = vmul.f32 1.0, %v311
  %v313 = vrcp.pop %v297
  %v314 = vmul.f32 1.0, %v313
  %v315 = vrcp.pop %v298
  %v316 = vmul.f32 1.0, %v315
  %v317 = vrcp.pop %v299
  %v318 = vmul.f32 1.0, %v317
  %v319 = vrcp.pop %v300
  %v320 = vmul.f32 1.0, %v319
  %v321 = vrcp.pop %v301
  %v322 = vmul.f32 1.0, %v321
  %v323 = vrcp.pop %v302
  %v324 = vmul.f32 1.0, %v323
  %v325 = vrcp.pop %v303
  %v326 = vmul.f32 1.0, %v325
  %v327 = vrcp.pop %v304
  %v328 = vmul.f32 1.0, %v327
  %v329 = vtanh.pop %v253
  %v330 = vtanh.pop %v254
  %v331 = vtanh.pop %v255
  %v332 = vtanh.pop %v256
  %v333 = vmul.f32 %v329, %v306
  %v334 = vmul.f32 %v330, %v308
  %v335 = vmul.f32 %v331, %v310
  %v336 = vmul.f32 %v332, %v312
  %v337 = vmul.f32 %v314, 0.0
  %v338 = vmul.f32 %v316, 0.0
  %v339 = vmul.f32 %v318, 0.0
  %v340 = vmul.f32 %v320, 0.0
  %v341 = vadd.f32 %v333, %v337
  %v342 = vadd.f32 %v334, %v338
  %v343 = vadd.f32 %v335, %v339
  %v344 = vadd.f32 %v336, %v340
  %v345 = vtanh.pop %v341
  %v346 = vtanh.pop %v342
  %v347 = vtanh.pop %v343
  %v348 = vtanh.pop %v344
  %v349 = vmul.f32 %v345, %v322
  %v350 = vmul.f32 %v346, %v324
  %v351 = vmul.f32 %v347, %v326
  %v352 = vmul.f32 %v348, %v328
  %s353 = scalar_lea.vmem %s0, 128
  %v354 = vld [vmem:[%s353] sm:$0xff]
  %v355 = vld [vmem:[%s353 + $0x8] sm:$0xff]
  %v356 = vld [vmem:[%s353 + $0x10] sm:$0xff]
  %v357 = vld [vmem:[%s353 + $0x18] sm:$0xff]
  %v358 = vld [vmem:[%s353 + $0x20] sm:$0xff]
  %v359 = vld [vmem:[%s353 + $0x28] sm:$0xff]
  %v360 = vld [vmem:[%s353 + $0x30] sm:$0xff]
  %v361 = vld [vmem:[%s353 + $0x38] sm:$0xff]
  %v362 = vld [vmem:[%s353 + $0x40] sm:$0xff]
  %v363 = vld [vmem:[%s353 + $0x48] sm:$0xff]
  %v364 = vld [vmem:[%s353 + $0x50] sm:$0xff]
  %v365 = vld [vmem:[%s353 + $0x58] sm:$0xff]
  %v366 = vld [vmem:[%s353 + $0x60] sm:$0xff]
  %v367 = vld [vmem:[%s353 + $0x68] sm:$0xff]
  %v368 = vld [vmem:[%s353 + $0x70] sm:$0xff]
  %v369 = vld [vmem:[%s353 + $0x78] sm:$0xff]
  %370 = vmatprep.subr.mxu0 0.0
  %371 = vmatpush1.msra.mxu0 0.0
  %372 = vmatprep.subr.mxu0 0.0
  %373 = vmatpush1.msra.mxu0 0.0
  %374 = vmatprep.subr.mxu0 0.0
  %375 = vmatpush1.msra.mxu0 0.0
  %376 = vmatprep.subr.mxu0 0.0
  %377 = vmatpush1.msra.mxu0 0.0
  %378 = vmatprep.subr.mxu0 0.0
  %379 = vmatpush1.msra.mxu0 0.0
  %380 = vmatprep.subr.mxu0 0.0
  %381 = vmatpush1.msra.mxu0 0.0
  %382 = vmatprep.subr.mxu0 0.0
  %383 = vmatpush1.msra.mxu0 0.0
  %384 = vmatprep.subr.mxu0 0.0
  %385 = vmatpush1.msra.mxu0 0.0
  %386 = vmatprep.subr.mxu0 0.0
  %387 = vmatpush1.msra.mxu0 0.0
  %388 = vmatprep.subr.mxu0 0.0
  %389 = vmatpush1.msra.mxu0 0.0
  %390 = vmatprep.subr.mxu0 0.0
  %391 = vmatpush1.msra.mxu0 0.0
  %392 = vmatprep.subr.mxu0 0.0
  %393 = vmatpush1.msra.mxu0 0.0
  %394 = vmatprep.subr.mxu0 0.0
  %395 = vmatpush1.msra.mxu0 %v352
  %396 = vmatprep.subr.mxu0 0.0
  %397 = vmatpush1.msra.mxu0 %v351
  %398 = vmatprep.subr.mxu0 0.0
  %399 = vmatpush1.msra.mxu0 %v350
  %400 = vmatprep.subr.mxu0 0.0
  %401 = vmatpush1.msra.mxu0 %v349
  %402 = vmatprep.subr.mxu0 0.0
  %403 = vmatpush2.msra.mxu0 0.0
  %404 = vmatprep.subr.mxu0 0.0
  %405 = vmatpush2.msra.mxu0 0.0
  %406 = vmatprep.subr.mxu0 0.0
  %407 = vmatpush2.msra.mxu0 0.0
  %408 = vmatprep.subr.mxu0 0.0
  %409 = vmatpush2.msra.mxu0 0.0
  %410 = vmatprep.subr.mxu0 0.0
  %411 = vmatpush2.msra.mxu0 0.0
  %412 = vmatprep.subr.mxu0 0.0
  %413 = vmatpush2.msra.mxu0 0.0
  %414 = vmatprep.subr.mxu0 0.0
  %415 = vmatpush2.msra.mxu0 0.0
  %416 = vmatprep.subr.mxu0 0.0
  %417 = vmatpush2.msra.mxu0 0.0
  %418 = vmatprep.subr.mxu0 0.0
  %419 = vmatpush2.msra.mxu0 0.0
  %420 = vmatprep.subr.mxu0 0.0
  %421 = vmatpush2.msra.mxu0 0.0
  %422 = vmatprep.subr.mxu0 0.0
  %423 = vmatpush2.msra.mxu0 0.0
  %424 = vmatprep.subr.mxu0 0.0
  %425 = vmatpush2.msra.mxu0 0.0
  %426 = vmatprep.subr.mxu0 0.0
  %427 = vmatpush2.msra.mxu0 0.0
  %428 = vmatprep.subr.mxu0 0.0
  %429 = vmatpush2.msra.mxu0 0.0
  %430 = vmatprep.subr.mxu0 0.0
  %431 = vmatpush2.msra.mxu0 0.0
  %432 = vmatprep.subr.mxu0 0.0
  %433 = vmatpush2.msra.mxu0 0.0
  %434 = vmatprep.mubr.f32.mxu0 0.0
  %435 = vmatmul.mubr.f32.gmra.mxu0 %v49
  %v436 = vpop.f32.mrf.mxu0
  %v437 = vadd.f32 0.0, %v436
  %v438 = vpop.f32.mrf.mxu0
  %439 = vmatprep.mubr.f32.mxu0 0.0
  %440 = vmatmul.mubr.f32.gmra.mxu0 %v52
  %v441 = vpop.f32.mrf.mxu0
  %v442 = vadd.f32 0.0, %v441
  %v443 = vpop.f32.mrf.mxu0
  %444 = vmatprep.mubr.f32.mxu0 0.0
  %445 = vmatmul.mubr.f32.gmra.mxu0 %v55
  %v446 = vpop.f32.mrf.mxu0
  %v447 = vadd.f32 0.0, %v446
  %v448 = vpop.f32.mrf.mxu0
  %449 = vmatprep.mubr.f32.mxu0 0.0
  %450 = vmatmul.mubr.f32.gmra.mxu0 %v58
  %v451 = vpop.f32.mrf.mxu0
  %v452 = vadd.f32 0.0, %v451
  %v453 = vpop.f32.mrf.mxu0
  %454 = vmatprep.mubr.f32.mxu0 0.0
  %455 = vmatmul.mubr.f32.gmra.mxu0 %v61
  %v456 = vpop.f32.mrf.mxu0
  %v457 = vadd.f32 0.0, %v456
  %v458 = vpop.f32.mrf.mxu0
  %459 = vmatprep.mubr.f32.mxu0 0.0
  %460 = vmatmul.mubr.f32.gmra.mxu0 %v64
  %v461 = vpop.f32.mrf.mxu0
  %v462 = vadd.f32 0.0, %v461
  %v463 = vpop.f32.mrf.mxu0
  %464 = vmatprep.mubr.f32.mxu0 0.0
  %465 = vmatmul.mubr.f32.gmra.mxu0 %v67
  %v466 = vpop.f32.mrf.mxu0
  %v467 = vadd.f32 0.0, %v466
  %v468 = vpop.f32.mrf.mxu0
  %469 = vmatprep.mubr.f32.mxu0 0.0
  %470 = vmatmul.mubr.f32.gmra.mxu0 %v70
  %v471 = vpop.f32.mrf.mxu0
  %v472 = vadd.f32 0.0, %v471
  %v473 = vpop.f32.mrf.mxu0
  %474 = vmatprep.mubr.f32.mxu0 0.0
  %475 = vmatmul.mubr.f32.gmra.mxu0 %v73
  %v476 = vpop.f32.mrf.mxu0
  %v477 = vadd.f32 0.0, %v476
  %v478 = vpop.f32.mrf.mxu0
  %479 = vmatprep.mubr.f32.mxu0 0.0
  %480 = vmatmul.mubr.f32.gmra.mxu0 %v76
  %v481 = vpop.f32.mrf.mxu0
  %v482 = vadd.f32 0.0, %v481
  %v483 = vpop.f32.mrf.mxu0
  %484 = vmatprep.mubr.f32.mxu0 0.0
  %485 = vmatmul.mubr.f32.gmra.mxu0 %v79
  %v486 = vpop.f32.mrf.mxu0
  %v487 = vadd.f32 0.0, %v486
  %v488 = vpop.f32.mrf.mxu0
  %489 = vmatprep.mubr.f32.mxu0 0.0
  %490 = vmatmul.mubr.f32.gmra.mxu0 %v82
  %v491 = vpop.f32.mrf.mxu0
  %v492 = vadd.f32 0.0, %v491
  %v493 = vpop.f32.mrf.mxu0
  %494 = vmatprep.mubr.f32.mxu0 0.0
  %495 = vmatmul.mubr.f32.gmra.mxu0 %v85
  %v496 = vpop.f32.mrf.mxu0
  %v497 = vadd.f32 0.0, %v496
  %v498 = vpop.f32.mrf.mxu0
  %499 = vmatprep.mubr.f32.mxu0 0.0
  %500 = vmatmul.mubr.f32.gmra.mxu0 %v88
  %v501 = vpop.f32.mrf.mxu0
  %v502 = vadd.f32 0.0, %v501
  %v503 = vpop.f32.mrf.mxu0
  %504 = vmatprep.mubr.f32.mxu0 0.0
  %505 = vmatmul.mubr.f32.gmra.mxu0 %v91
  %v506 = vpop.f32.mrf.mxu0
  %v507 = vadd.f32 0.0, %v506
  %v508 = vpop.f32.mrf.mxu0
  %509 = vmatprep.mubr.f32.mxu0 0.0
  %510 = vmatmul.mubr.f32.gmra.mxu0 %v94
  %v511 = vpop.f32.mrf.mxu0
  %v512 = vadd.f32 0.0, %v511
  %v513 = vpop.f32.mrf.mxu0
  %514 = vdwg.mxu0
  %v515 = vadd.f32 %v354, %v437
  %v516 = vadd.f32 %v355, %v442
  %v517 = vadd.f32 %v356, %v447
  %v518 = vadd.f32 %v357, %v452
  %v519 = vadd.f32 %v358, %v457
  %v520 = vadd.f32 %v359, %v462
  %v521 = vadd.f32 %v360, %v467
  %v522 = vadd.f32 %v361, %v472
  %v523 = vadd.f32 %v362, %v477
  %v524 = vadd.f32 %v363, %v482
  %v525 = vadd.f32 %v364, %v487
  %v526 = vadd.f32 %v365, %v492
  %v527 = vadd.f32 %v366, %v497
  %v528 = vadd.f32 %v367, %v502
  %v529 = vadd.f32 %v368, %v507
  %v530 = vadd.f32 %v369, %v512
  %v531 = vxor.u32 %v515, 2147483648
  %v532 = vxor.u32 %v516, 2147483648
  %v533 = vxor.u32 %v517, 2147483648
  %v534 = vxor.u32 %v518, 2147483648
  %v535 = vxor.u32 %v519, 2147483648
  %v536 = vxor.u32 %v520, 2147483648
  %v537 = vxor.u32 %v521, 2147483648
  %v538 = vxor.u32 %v522, 2147483648
  %v539 = vxor.u32 %v523, 2147483648
  %v540 = vxor.u32 %v524, 2147483648
  %v541 = vxor.u32 %v525, 2147483648
  %v542 = vxor.u32 %v526, 2147483648
  %v543 = vmul.f32 %v531, 1.442695
  %v544 = vpow.pop %v543
  %v545 = vmul.f32 %v532, 1.442695
  %v546 = vpow.pop %v545
  %v547 = vmul.f32 %v533, 1.442695
  %v548 = vpow.pop %v547
  %v549 = vmul.f32 %v534, 1.442695
  %v550 = vpow.pop %v549
  %v551 = vmul.f32 %v535, 1.442695
  %v552 = vpow.pop %v551
  %v553 = vmul.f32 %v536, 1.442695
  %v554 = vpow.pop %v553
  %v555 = vmul.f32 %v537, 1.442695
  %v556 = vpow.pop %v555
  %v557 = vmul.f32 %v538, 1.442695
  %v558 = vpow.pop %v557
  %v559 = vmul.f32 %v539, 1.442695
  %v560 = vpow.pop %v559
  %v561 = vmul.f32 %v540, 1.442695
  %v562 = vpow.pop %v561
  %v563 = vmul.f32 %v541, 1.442695
  %v564 = vpow.pop %v563
  %v565 = vmul.f32 %v542, 1.442695
  %v566 = vpow.pop %v565
  %v567 = vadd.f32 %v544, 1.0
  %v568 = vadd.f32 %v546, 1.0
  %v569 = vadd.f32 %v548, 1.0
  %v570 = vadd.f32 %v550, 1.0
  %v571 = vadd.f32 %v552, 1.0
  %v572 = vadd.f32 %v554, 1.0
  %v573 = vadd.f32 %v556, 1.0
  %v574 = vadd.f32 %v558, 1.0
  %v575 = vadd.f32 %v560, 1.0
  %v576 = vadd.f32 %v562, 1.0
  %v577 = vadd.f32 %v564, 1.0
  %v578 = vadd.f32 %v566, 1.0
  %v579 = vrcp.pop %v567
  %v580 = vmul.f32 1.0, %v579
  %v581 = vrcp.pop %v568
  %v582 = vmul.f32 1.0, %v581
  %v583 = vrcp.pop %v569
  %v584 = vmul.f32 1.0, %v583
  %v585 = vrcp.pop %v570
  %v586 = vmul.f32 1.0, %v585
  %v587 = vrcp.pop %v571
  %v588 = vmul.f32 1.0, %v587
  %v589 = vrcp.pop %v572
  %v590 = vmul.f32 1.0, %v589
  %v591 = vrcp.pop %v573
  %v592 = vmul.f32 1.0, %v591
  %v593 = vrcp.pop %v574
  %v594 = vmul.f32 1.0, %v593
  %v595 = vrcp.pop %v575
  %v596 = vmul.f32 1.0, %v595
  %v597 = vrcp.pop %v576
  %v598 = vmul.f32 1.0, %v597
  %v599 = vrcp.pop %v577
  %v600 = vmul.f32 1.0, %v599
  %v601 = vrcp.pop %v578
  %v602 = vmul.f32 1.0, %v601
  %v603 = vtanh.pop %v527
  %v604 = vtanh.pop %v528
  %v605 = vtanh.pop %v529
  %v606 = vtanh.pop %v530
  %v607 = vmul.f32 %v603, %v580
  %v608 = vmul.f32 %v604, %v582
  %v609 = vmul.f32 %v605, %v584
  %v610 = vmul.f32 %v606, %v586
  %v611 = vmul.f32 %v341, %v588
  %v612 = vmul.f32 %v342, %v590
  %v613 = vmul.f32 %v343, %v592
  %v614 = vmul.f32 %v344, %v594
  %v615 = vadd.f32 %v607, %v611
  %v616 = vadd.f32 %v608, %v612
  %v617 = vadd.f32 %v609, %v613
  %v618 = vadd.f32 %v610, %v614
  %v619 = vtanh.pop %v615
  %v620 = vtanh.pop %v616
  %v621 = vtanh.pop %v617
  %v622 = vtanh.pop %v618
  %v623 = vmul.f32 %v619, %v596
  %v624 = vmul.f32 %v620, %v598
  %v625 = vmul.f32 %v621, %v600
  %v626 = vmul.f32 %v622, %v602
  %s627 = scalar_lea.vmem %s0, 256
  %v628 = vld [vmem:[%s627] sm:$0xff]
  %v629 = vld [vmem:[%s627 + $0x8] sm:$0xff]
  %v630 = vld [vmem:[%s627 + $0x10] sm:$0xff]
  %v631 = vld [vmem:[%s627 + $0x18] sm:$0xff]
  %v632 = vld [vmem:[%s627 + $0x20] sm:$0xff]
  %v633 = vld [vmem:[%s627 + $0x28] sm:$0xff]
  %v634 = vld [vmem:[%s627 + $0x30] sm:$0xff]
  %v635 = vld [vmem:[%s627 + $0x38] sm:$0xff]
  %v636 = vld [vmem:[%s627 + $0x40] sm:$0xff]
  %v637 = vld [vmem:[%s627 + $0x48] sm:$0xff]
  %v638 = vld [vmem:[%s627 + $0x50] sm:$0xff]
  %v639 = vld [vmem:[%s627 + $0x58] sm:$0xff]
  %v640 = vld [vmem:[%s627 + $0x60] sm:$0xff]
  %v641 = vld [vmem:[%s627 + $0x68] sm:$0xff]
  %v642 = vld [vmem:[%s627 + $0x70] sm:$0xff]
  %v643 = vld [vmem:[%s627 + $0x78] sm:$0xff]
  %644 = vmatprep.subr.mxu0 0.0
  %645 = vmatpush1.msra.mxu0 0.0
  %646 = vmatprep.subr.mxu0 0.0
  %647 = vmatpush1.msra.mxu0 0.0
  %648 = vmatprep.subr.mxu0 0.0
  %649 = vmatpush1.msra.mxu0 0.0
  %650 = vmatprep.subr.mxu0 0.0
  %651 = vmatpush1.msra.mxu0 0.0
  %652 = vmatprep.subr.mxu0 0.0
  %653 = vmatpush1.msra.mxu0 0.0
  %654 = vmatprep.subr.mxu0 0.0
  %655 = vmatpush1.msra.mxu0 0.0
  %656 = vmatprep.subr.mxu0 0.0
  %657 = vmatpush1.msra.mxu0 0.0
  %658 = vmatprep.subr.mxu0 0.0
  %659 = vmatpush1.msra.mxu0 0.0
  %660 = vmatprep.subr.mxu0 0.0
  %661 = vmatpush1.msra.mxu0 0.0
  %662 = vmatprep.subr.mxu0 0.0
  %663 = vmatpush1.msra.mxu0 0.0
  %664 = vmatprep.subr.mxu0 0.0
  %665 = vmatpush1.msra.mxu0 0.0
  %666 = vmatprep.subr.mxu0 0.0
  %667 = vmatpush1.msra.mxu0 0.0
  %668 = vmatprep.subr.mxu0 0.0
  %669 = vmatpush1.msra.mxu0 %v626
  %670 = vmatprep.subr.mxu0 0.0
  %671 = vmatpush1.msra.mxu0 %v625
  %672 = vmatprep.subr.mxu0 0.0
  %673 = vmatpush1.msra.mxu0 %v624
  %674 = vmatprep.subr.mxu0 0.0
  %675 = vmatpush1.msra.mxu0 %v623
  %676 = vmatprep.subr.mxu0 0.0
  %677 = vmatpush2.msra.mxu0 0.0
  %678 = vmatprep.subr.mxu0 0.0
  %679 = vmatpush2.msra.mxu0 0.0
  %680 = vmatprep.subr.mxu0 0.0
  %681 = vmatpush2.msra.mxu0 0.0
  %682 = vmatprep.subr.mxu0 0.0
  %683 = vmatpush2.msra.mxu0 0.0
  %684 = vmatprep.subr.mxu0 0.0
  %685 = vmatpush2.msra.mxu0 0.0
  %686 = vmatprep.subr.mxu0 0.0
  %687 = vmatpush2.msra.mxu0 0.0
  %688 = vmatprep.subr.mxu0 0.0
  %689 = vmatpush2.msra.mxu0 0.0
  %690 = vmatprep.subr.mxu0 0.0
  %691 = vmatpush2.msra.mxu0 0.0
  %692 = vmatprep.subr.mxu0 0.0
  %693 = vmatpush2.msra.mxu0 0.0
  %694 = vmatprep.subr.mxu0 0.0
  %695 = vmatpush2.msra.mxu0 0.0
  %696 = vmatprep.subr.mxu0 0.0
  %697 = vmatpush2.msra.mxu0 0.0
  %698 = vmatprep.subr.mxu0 0.0
  %699 = vmatpush2.msra.mxu0 0.0
  %700 = vmatprep.subr.mxu0 0.0
  %701 = vmatpush2.msra.mxu0 0.0
  %702 = vmatprep.subr.mxu0 0.0
  %703 = vmatpush2.msra.mxu0 0.0
  %704 = vmatprep.subr.mxu0 0.0
  %705 = vmatpush2.msra.mxu0 0.0
  %706 = vmatprep.subr.mxu0 0.0
  %707 = vmatpush2.msra.mxu0 0.0
  %708 = vmatprep.mubr.f32.mxu0 0.0
  %709 = vmatmul.mubr.f32.gmra.mxu0 %v49
  %v710 = vpop.f32.mrf.mxu0
  %v711 = vadd.f32 0.0, %v710
  %v712 = vpop.f32.mrf.mxu0
  %713 = vmatprep.mubr.f32.mxu0 0.0
  %714 = vmatmul.mubr.f32.gmra.mxu0 %v52
  %v715 = vpop.f32.mrf.mxu0
  %v716 = vadd.f32 0.0, %v715
  %v717 = vpop.f32.mrf.mxu0
  %718 = vmatprep.mubr.f32.mxu0 0.0
  %719 = vmatmul.mubr.f32.gmra.mxu0 %v55
  %v720 = vpop.f32.mrf.mxu0
  %v721 = vadd.f32 0.0, %v720
  %v722 = vpop.f32.mrf.mxu0
  %723 = vmatprep.mubr.f32.mxu0 0.0
  %724 = vmatmul.mubr.f32.gmra.mxu0 %v58
  %v725 = vpop.f32.mrf.mxu0
  %v726 = vadd.f32 0.0, %v725
  %v727 = vpop.f32.mrf.mxu0
  %728 = vmatprep.mubr.f32.mxu0 0.0
  %729 = vmatmul.mubr.f32.gmra.mxu0 %v61
  %v730 = vpop.f32.mrf.mxu0
  %v731 = vadd.f32 0.0, %v730
  %v732 = vpop.f32.mrf.mxu0
  %733 = vmatprep.mubr.f32.mxu0 0.0
  %734 = vmatmul.mubr.f32.gmra.mxu0 %v64
  %v735 = vpop.f32.mrf.mxu0
  %v736 = vadd.f32 0.0, %v735
  %v737 = vpop.f32.mrf.mxu0
  %738 = vmatprep.mubr.f32.mxu0 0.0
  %739 = vmatmul.mubr.f32.gmra.mxu0 %v67
  %v740 = vpop.f32.mrf.mxu0
  %v741 = vadd.f32 0.0, %v740
  %v742 = vpop.f32.mrf.mxu0
  %743 = vmatprep.mubr.f32.mxu0 0.0
  %744 = vmatmul.mubr.f32.gmra.mxu0 %v70
  %v745 = vpop.f32.mrf.mxu0
  %v746 = vadd.f32 0.0, %v745
  %v747 = vpop.f32.mrf.mxu0
  %748 = vmatprep.mubr.f32.mxu0 0.0
  %749 = vmatmul.mubr.f32.gmra.mxu0 %v73
  %v750 = vpop.f32.mrf.mxu0
  %v751 = vadd.f32 0.0, %v750
  %v752 = vpop.f32.mrf.mxu0
  %753 = vmatprep.mubr.f32.mxu0 0.0
  %754 = vmatmul.mubr.f32.gmra.mxu0 %v76
  %v755 = vpop.f32.mrf.mxu0
  %v756 = vadd.f32 0.0, %v755
  %v757 = vpop.f32.mrf.mxu0
  %758 = vmatprep.mubr.f32.mxu0 0.0
  %759 = vmatmul.mubr.f32.gmra.mxu0 %v79
  %v760 = vpop.f32.mrf.mxu0
  %v761 = vadd.f32 0.0, %v760
  %v762 = vpop.f32.mrf.mxu0
  %763 = vmatprep.mubr.f32.mxu0 0.0
  %764 = vmatmul.mubr.f32.gmra.mxu0 %v82
  %v765 = vpop.f32.mrf.mxu0
  %v766 = vadd.f32 0.0, %v765
  %v767 = vpop.f32.mrf.mxu0
  %768 = vmatprep.mubr.f32.mxu0 0.0
  %769 = vmatmul.mubr.f32.gmra.mxu0 %v85
  %v770 = vpop.f32.mrf.mxu0
  %v771 = vadd.f32 0.0, %v770
  %v772 = vpop.f32.mrf.mxu0
  %773 = vmatprep.mubr.f32.mxu0 0.0
  %774 = vmatmul.mubr.f32.gmra.mxu0 %v88
  %v775 = vpop.f32.mrf.mxu0
  %v776 = vadd.f32 0.0, %v775
  %v777 = vpop.f32.mrf.mxu0
  %778 = vmatprep.mubr.f32.mxu0 0.0
  %779 = vmatmul.mubr.f32.gmra.mxu0 %v91
  %v780 = vpop.f32.mrf.mxu0
  %v781 = vadd.f32 0.0, %v780
  %v782 = vpop.f32.mrf.mxu0
  %783 = vmatprep.mubr.f32.mxu0 0.0
  %784 = vmatmul.mubr.f32.gmra.mxu0 %v94
  %v785 = vpop.f32.mrf.mxu0
  %v786 = vadd.f32 0.0, %v785
  %v787 = vpop.f32.mrf.mxu0
  %788 = vdwg.mxu0
  %v789 = vadd.f32 %v628, %v711
  %v790 = vadd.f32 %v629, %v716
  %v791 = vadd.f32 %v630, %v721
  %v792 = vadd.f32 %v631, %v726
  %v793 = vadd.f32 %v632, %v731
  %v794 = vadd.f32 %v633, %v736
  %v795 = vadd.f32 %v634, %v741
  %v796 = vadd.f32 %v635, %v746
  %v797 = vadd.f32 %v636, %v751
  %v798 = vadd.f32 %v637, %v756
  %v799 = vadd.f32 %v638, %v761
  %v800 = vadd.f32 %v639, %v766
  %v801 = vadd.f32 %v640, %v771
  %v802 = vadd.f32 %v641, %v776
  %v803 = vadd.f32 %v642, %v781
  %v804 = vadd.f32 %v643, %v786
  %v805 = vxor.u32 %v789, 2147483648
  %v806 = vxor.u32 %v790, 2147483648
  %v807 = vxor.u32 %v791, 2147483648
  %v808 = vxor.u32 %v792, 2147483648
  %v809 = vxor.u32 %v793, 2147483648
  %v810 = vxor.u32 %v794, 2147483648
  %v811 = vxor.u32 %v795, 2147483648
  %v812 = vxor.u32 %v796, 2147483648
  %v813 = vxor.u32 %v797, 2147483648
  %v814 = vxor.u32 %v798, 2147483648
  %v815 = vxor.u32 %v799, 2147483648
  %v816 = vxor.u32 %v800, 2147483648
  %v817 = vmul.f32 %v805, 1.442695
  %v818 = vpow.pop %v817
  %v819 = vmul.f32 %v806, 1.442695
  %v820 = vpow.pop %v819
  %v821 = vmul.f32 %v807, 1.442695
  %v822 = vpow.pop %v821
  %v823 = vmul.f32 %v808, 1.442695
  %v824 = vpow.pop %v823
  %v825 = vmul.f32 %v809, 1.442695
  %v826 = vpow.pop %v825
  %v827 = vmul.f32 %v810, 1.442695
  %v828 = vpow.pop %v827
  %v829 = vmul.f32 %v811, 1.442695
  %v830 = vpow.pop %v829
  %v831 = vmul.f32 %v812, 1.442695
  %v832 = vpow.pop %v831
  %v833 = vmul.f32 %v813, 1.442695
  %v834 = vpow.pop %v833
  %v835 = vmul.f32 %v814, 1.442695
  %v836 = vpow.pop %v835
  %v837 = vmul.f32 %v815, 1.442695
  %v838 = vpow.pop %v837
  %v839 = vmul.f32 %v816, 1.442695
  %v840 = vpow.pop %v839
  %v841 = vadd.f32 %v818, 1.0
  %v842 = vadd.f32 %v820, 1.0
  %v843 = vadd.f32 %v822, 1.0
  %v844 = vadd.f32 %v824, 1.0
  %v845 = vadd.f32 %v826, 1.0
  %v846 = vadd.f32 %v828, 1.0
  %v847 = vadd.f32 %v830, 1.0
  %v848 = vadd.f32 %v832, 1.0
  %v849 = vadd.f32 %v834, 1.0
  %v850 = vadd.f32 %v836, 1.0
  %v851 = vadd.f32 %v838, 1.0
  %v852 = vadd.f32 %v840, 1.0
  %v853 = vrcp.pop %v841
  %v854 = vmul.f32 1.0, %v853
  %v855 = vrcp.pop %v842
  %v856 = vmul.f32 1.0, %v855
  %v857 = vrcp.pop %v843
  %v858 = vmul.f32 1.0, %v857
  %v859 = vrcp.pop %v844
  %v860 = vmul.f32 1.0, %v859
  %v861 = vrcp.pop %v845
  %v862 = vmul.f32 1.0, %v861
  %v863 = vrcp.pop %v846
  %v864 = vmul.f32 1.0, %v863
  %v865 = vrcp.pop %v847
  %v866 = vmul.f32 1.0, %v865
  %v867 = vrcp.pop %v848
  %v868 = vmul.f32 1.0, %v867
  %v869 = vrcp.pop %v849
  %v870 = vmul.f32 1.0, %v869
  %v871 = vrcp.pop %v850
  %v872 = vmul.f32 1.0, %v871
  %v873 = vrcp.pop %v851
  %v874 = vmul.f32 1.0, %v873
  %v875 = vrcp.pop %v852
  %v876 = vmul.f32 1.0, %v875
  %v877 = vtanh.pop %v801
  %v878 = vtanh.pop %v802
  %v879 = vtanh.pop %v803
  %v880 = vtanh.pop %v804
  %v881 = vmul.f32 %v877, %v854
  %v882 = vmul.f32 %v878, %v856
  %v883 = vmul.f32 %v879, %v858
  %v884 = vmul.f32 %v880, %v860
  %v885 = vmul.f32 %v615, %v862
  %v886 = vmul.f32 %v616, %v864
  %v887 = vmul.f32 %v617, %v866
  %v888 = vmul.f32 %v618, %v868
  %v889 = vadd.f32 %v881, %v885
  %v890 = vadd.f32 %v882, %v886
  %v891 = vadd.f32 %v883, %v887
  %v892 = vadd.f32 %v884, %v888
  %v893 = vtanh.pop %v889
  %v894 = vtanh.pop %v890
  %v895 = vtanh.pop %v891
  %v896 = vtanh.pop %v892
  %v897 = vmul.f32 %v893, %v870
  %v898 = vmul.f32 %v894, %v872
  %v899 = vmul.f32 %v895, %v874
  %v900 = vmul.f32 %v896, %v876
  %s901 = scalar_lea.vmem %s0, 384
  %v902 = vld [vmem:[%s901] sm:$0xff]
  %v903 = vld [vmem:[%s901 + $0x8] sm:$0xff]
  %v904 = vld [vmem:[%s901 + $0x10] sm:$0xff]
  %v905 = vld [vmem:[%s901 + $0x18] sm:$0xff]
  %v906 = vld [vmem:[%s901 + $0x20] sm:$0xff]
  %v907 = vld [vmem:[%s901 + $0x28] sm:$0xff]
  %v908 = vld [vmem:[%s901 + $0x30] sm:$0xff]
  %v909 = vld [vmem:[%s901 + $0x38] sm:$0xff]
  %v910 = vld [vmem:[%s901 + $0x40] sm:$0xff]
  %v911 = vld [vmem:[%s901 + $0x48] sm:$0xff]
  %v912 = vld [vmem:[%s901 + $0x50] sm:$0xff]
  %v913 = vld [vmem:[%s901 + $0x58] sm:$0xff]
  %v914 = vld [vmem:[%s901 + $0x60] sm:$0xff]
  %v915 = vld [vmem:[%s901 + $0x68] sm:$0xff]
  %v916 = vld [vmem:[%s901 + $0x70] sm:$0xff]
  %v917 = vld [vmem:[%s901 + $0x78] sm:$0xff]
  %918 = vmatprep.subr.mxu0 0.0
  %919 = vmatpush1.msra.mxu0 0.0
  %920 = vmatprep.subr.mxu0 0.0
  %921 = vmatpush1.msra.mxu0 0.0
  %922 = vmatprep.subr.mxu0 0.0
  %923 = vmatpush1.msra.mxu0 0.0
  %924 = vmatprep.subr.mxu0 0.0
  %925 = vmatpush1.msra.mxu0 0.0
  %926 = vmatprep.subr.mxu0 0.0
  %927 = vmatpush1.msra.mxu0 0.0
  %928 = vmatprep.subr.mxu0 0.0
  %929 = vmatpush1.msra.mxu0 0.0
  %930 = vmatprep.subr.mxu0 0.0
  %931 = vmatpush1.msra.mxu0 0.0
  %932 = vmatprep.subr.mxu0 0.0
  %933 = vmatpush1.msra.mxu0 0.0
  %934 = vmatprep.subr.mxu0 0.0
  %935 = vmatpush1.msra.mxu0 0.0
  %936 = vmatprep.subr.mxu0 0.0
  %937 = vmatpush1.msra.mxu0 0.0
  %938 = vmatprep.subr.mxu0 0.0
  %939 = vmatpush1.msra.mxu0 0.0
  %940 = vmatprep.subr.mxu0 0.0
  %941 = vmatpush1.msra.mxu0 0.0
  %942 = vmatprep.subr.mxu0 0.0
  %943 = vmatpush1.msra.mxu0 %v900
  %944 = vmatprep.subr.mxu0 0.0
  %945 = vmatpush1.msra.mxu0 %v899
  %946 = vmatprep.subr.mxu0 0.0
  %947 = vmatpush1.msra.mxu0 %v898
  %948 = vmatprep.subr.mxu0 0.0
  %949 = vmatpush1.msra.mxu0 %v897
  %950 = vmatprep.subr.mxu0 0.0
  %951 = vmatpush2.msra.mxu0 0.0
  %952 = vmatprep.subr.mxu0 0.0
  %953 = vmatpush2.msra.mxu0 0.0
  %954 = vmatprep.subr.mxu0 0.0
  %955 = vmatpush2.msra.mxu0 0.0
  %956 = vmatprep.subr.mxu0 0.0
  %957 = vmatpush2.msra.mxu0 0.0
  %958 = vmatprep.subr.mxu0 0.0
  %959 = vmatpush2.msra.mxu0 0.0
  %960 = vmatprep.subr.mxu0 0.0
  %961 = vmatpush2.msra.mxu0 0.0
  %962 = vmatprep.subr.mxu0 0.0
  %963 = vmatpush2.msra.mxu0 0.0
  %964 = vmatprep.subr.mxu0 0.0
  %965 = vmatpush2.msra.mxu0 0.0
  %966 = vmatprep.subr.mxu0 0.0
  %967 = vmatpush2.msra.mxu0 0.0
  %968 = vmatprep.subr.mxu0 0.0
  %969 = vmatpush2.msra.mxu0 0.0
  %970 = vmatprep.subr.mxu0 0.0
  %971 = vmatpush2.msra.mxu0 0.0
  %972 = vmatprep.subr.mxu0 0.0
  %973 = vmatpush2.msra.mxu0 0.0
  %974 = vmatprep.subr.mxu0 0.0
  %975 = vmatpush2.msra.mxu0 0.0
  %976 = vmatprep.subr.mxu0 0.0
  %977 = vmatpush2.msra.mxu0 0.0
  %978 = vmatprep.subr.mxu0 0.0
  %979 = vmatpush2.msra.mxu0 0.0
  %980 = vmatprep.subr.mxu0 0.0
  %981 = vmatpush2.msra.mxu0 0.0
  %982 = vmatprep.mubr.f32.mxu0 0.0
  %983 = vmatmul.mubr.f32.gmra.mxu0 %v49
  %v984 = vpop.f32.mrf.mxu0
  %v985 = vadd.f32 0.0, %v984
  %v986 = vpop.f32.mrf.mxu0
  %987 = vmatprep.mubr.f32.mxu0 0.0
  %988 = vmatmul.mubr.f32.gmra.mxu0 %v52
  %v989 = vpop.f32.mrf.mxu0
  %v990 = vadd.f32 0.0, %v989
  %v991 = vpop.f32.mrf.mxu0
  %992 = vmatprep.mubr.f32.mxu0 0.0
  %993 = vmatmul.mubr.f32.gmra.mxu0 %v55
  %v994 = vpop.f32.mrf.mxu0
  %v995 = vadd.f32 0.0, %v994
  %v996 = vpop.f32.mrf.mxu0
  %997 = vmatprep.mubr.f32.mxu0 0.0
  %998 = vmatmul.mubr.f32.gmra.mxu0 %v58
  %v999 = vpop.f32.mrf.mxu0
  %v1000 = vadd.f32 0.0, %v999
  %v1001 = vpop.f32.mrf.mxu0
  %1002 = vmatprep.mubr.f32.mxu0 0.0
  %1003 = vmatmul.mubr.f32.gmra.mxu0 %v61
  %v1004 = vpop.f32.mrf.mxu0
  %v1005 = vadd.f32 0.0, %v1004
  %v1006 = vpop.f32.mrf.mxu0
  %1007 = vmatprep.mubr.f32.mxu0 0.0
  %1008 = vmatmul.mubr.f32.gmra.mxu0 %v64
  %v1009 = vpop.f32.mrf.mxu0
  %v1010 = vadd.f32 0.0, %v1009
  %v1011 = vpop.f32.mrf.mxu0
  %1012 = vmatprep.mubr.f32.mxu0 0.0
  %1013 = vmatmul.mubr.f32.gmra.mxu0 %v67
  %v1014 = vpop.f32.mrf.mxu0
  %v1015 = vadd.f32 0.0, %v1014
  %v1016 = vpop.f32.mrf.mxu0
  %1017 = vmatprep.mubr.f32.mxu0 0.0
  %1018 = vmatmul.mubr.f32.gmra.mxu0 %v70
  %v1019 = vpop.f32.mrf.mxu0
  %v1020 = vadd.f32 0.0, %v1019
  %v1021 = vpop.f32.mrf.mxu0
  %1022 = vmatprep.mubr.f32.mxu0 0.0
  %1023 = vmatmul.mubr.f32.gmra.mxu0 %v73
  %v1024 = vpop.f32.mrf.mxu0
  %v1025 = vadd.f32 0.0, %v1024
  %v1026 = vpop.f32.mrf.mxu0
  %1027 = vmatprep.mubr.f32.mxu0 0.0
  %1028 = vmatmul.mubr.f32.gmra.mxu0 %v76
  %v1029 = vpop.f32.mrf.mxu0
  %v1030 = vadd.f32 0.0, %v1029
  %v1031 = vpop.f32.mrf.mxu0
  %1032 = vmatprep.mubr.f32.mxu0 0.0
  %1033 = vmatmul.mubr.f32.gmra.mxu0 %v79
  %v1034 = vpop.f32.mrf.mxu0
  %v1035 = vadd.f32 0.0, %v1034
  %v1036 = vpop.f32.mrf.mxu0
  %1037 = vmatprep.mubr.f32.mxu0 0.0
  %1038 = vmatmul.mubr.f32.gmra.mxu0 %v82
  %v1039 = vpop.f32.mrf.mxu0
  %v1040 = vadd.f32 0.0, %v1039
  %v1041 = vpop.f32.mrf.mxu0
  %1042 = vmatprep.mubr.f32.mxu0 0.0
  %1043 = vmatmul.mubr.f32.gmra.mxu0 %v85
  %v1044 = vpop.f32.mrf.mxu0
  %v1045 = vadd.f32 0.0, %v1044
  %v1046 = vpop.f32.mrf.mxu0
  %1047 = vmatprep.mubr.f32.mxu0 0.0
  %1048 = vmatmul.mubr.f32.gmra.mxu0 %v88
  %v1049 = vpop.f32.mrf.mxu0
  %v1050 = vadd.f32 0.0, %v1049
  %v1051 = vpop.f32.mrf.mxu0
  %1052 = vmatprep.mubr.f32.mxu0 0.0
  %1053 = vmatmul.mubr.f32.gmra.mxu0 %v91
  %v1054 = vpop.f32.mrf.mxu0
  %v1055 = vadd.f32 0.0, %v1054
  %v1056 = vpop.f32.mrf.mxu0
  %1057 = vmatprep.mubr.f32.mxu0 0.0
  %1058 = vmatmul.mubr.f32.gmra.mxu0 %v94
  %v1059 = vpop.f32.mrf.mxu0
  %v1060 = vadd.f32 0.0, %v1059
  %v1061 = vpop.f32.mrf.mxu0
  %1062 = vdwg.mxu0
  %v1063 = vadd.f32 %v902, %v985
  %v1064 = vadd.f32 %v903, %v990
  %v1065 = vadd.f32 %v904, %v995
  %v1066 = vadd.f32 %v905, %v1000
  %v1067 = vadd.f32 %v906, %v1005
  %v1068 = vadd.f32 %v907, %v1010
  %v1069 = vadd.f32 %v908, %v1015
  %v1070 = vadd.f32 %v909, %v1020
  %v1071 = vadd.f32 %v910, %v1025
  %v1072 = vadd.f32 %v911, %v1030
  %v1073 = vadd.f32 %v912, %v1035
  %v1074 = vadd.f32 %v913, %v1040
  %v1075 = vadd.f32 %v914, %v1045
  %v1076 = vadd.f32 %v915, %v1050
  %v1077 = vadd.f32 %v916, %v1055
  %v1078 = vadd.f32 %v917, %v1060
  %v1079 = vxor.u32 %v1063, 2147483648
  %v1080 = vxor.u32 %v1064, 2147483648
  %v1081 = vxor.u32 %v1065, 2147483648
  %v1082 = vxor.u32 %v1066, 2147483648
  %v1083 = vxor.u32 %v1067, 2147483648
  %v1084 = vxor.u32 %v1068, 2147483648
  %v1085 = vxor.u32 %v1069, 2147483648
  %v1086 = vxor.u32 %v1070, 2147483648
  %v1087 = vxor.u32 %v1071, 2147483648
  %v1088 = vxor.u32 %v1072, 2147483648
  %v1089 = vxor.u32 %v1073, 2147483648
  %v1090 = vxor.u32 %v1074, 2147483648
  %v1091 = vmul.f32 %v1079, 1.442695
  %v1092 = vpow.pop %v1091
  %v1093 = vmul.f32 %v1080, 1.442695
  %v1094 = vpow.pop %v1093
  %v1095 = vmul.f32 %v1081, 1.442695
  %v1096 = vpow.pop %v1095
  %v1097 = vmul.f32 %v1082, 1.442695
  %v1098 = vpow.pop %v1097
  %v1099 = vmul.f32 %v1083, 1.442695
  %v1100 = vpow.pop %v1099
  %v1101 = vmul.f32 %v1084, 1.442695
  %v1102 = vpow.pop %v1101
  %v1103 = vmul.f32 %v1085, 1.442695
  %v1104 = vpow.pop %v1103
  %v1105 = vmul.f32 %v1086, 1.442695
  %v1106 = vpow.pop %v1105
  %v1107 = vmul.f32 %v1087, 1.442695
  %v1108 = vpow.pop %v1107
  %v1109 = vmul.f32 %v1088, 1.442695
  %v1110 = vpow.pop %v1109
  %v1111 = vmul.f32 %v1089, 1.442695
  %v1112 = vpow.pop %v1111
  %v1113 = vmul.f32 %v1090, 1.442695
  %v1114 = vpow.pop %v1113
  %v1115 = vadd.f32 %v1092, 1.0
  %v1116 = vadd.f32 %v1094, 1.0
  %v1117 = vadd.f32 %v1096, 1.0
  %v1118 = vadd.f32 %v1098, 1.0
  %v1119 = vadd.f32 %v1100, 1.0
  %v1120 = vadd.f32 %v1102, 1.0
  %v1121 = vadd.f32 %v1104, 1.0
  %v1122 = vadd.f32 %v1106, 1.0
  %v1123 = vadd.f32 %v1108, 1.0
  %v1124 = vadd.f32 %v1110, 1.0
  %v1125 = vadd.f32 %v1112, 1.0
  %v1126 = vadd.f32 %v1114, 1.0
  %v1127 = vrcp.pop %v1115
  %v1128 = vmul.f32 1.0, %v1127
  %v1129 = vrcp.pop %v1116
  %v1130 = vmul.f32 1.0, %v1129
  %v1131 = vrcp.pop %v1117
  %v1132 = vmul.f32 1.0, %v1131
  %v1133 = vrcp.pop %v1118
  %v1134 = vmul.f32 1.0, %v1133
  %v1135 = vrcp.pop %v1119
  %v1136 = vmul.f32 1.0, %v1135
  %v1137 = vrcp.pop %v1120
  %v1138 = vmul.f32 1.0, %v1137
  %v1139 = vrcp.pop %v1121
  %v1140 = vmul.f32 1.0, %v1139
  %v1141 = vrcp.pop %v1122
  %v1142 = vmul.f32 1.0, %v1141
  %v1143 = vrcp.pop %v1123
  %v1144 = vmul.f32 1.0, %v1143
  %v1145 = vrcp.pop %v1124
  %v1146 = vmul.f32 1.0, %v1145
  %v1147 = vrcp.pop %v1125
  %v1148 = vmul.f32 1.0, %v1147
  %v1149 = vrcp.pop %v1126
  %v1150 = vmul.f32 1.0, %v1149
  %v1151 = vtanh.pop %v1075
  %v1152 = vtanh.pop %v1076
  %v1153 = vtanh.pop %v1077
  %v1154 = vtanh.pop %v1078
  %v1155 = vmul.f32 %v1151, %v1128
  %v1156 = vmul.f32 %v1152, %v1130
  %v1157 = vmul.f32 %v1153, %v1132
  %v1158 = vmul.f32 %v1154, %v1134
  %v1159 = vmul.f32 %v889, %v1136
  %v1160 = vmul.f32 %v890, %v1138
  %v1161 = vmul.f32 %v891, %v1140
  %v1162 = vmul.f32 %v892, %v1142
  %v1163 = vadd.f32 %v1155, %v1159
  %v1164 = vadd.f32 %v1156, %v1160
  %v1165 = vadd.f32 %v1157, %v1161
  %v1166 = vadd.f32 %v1158, %v1162
  %v1167 = vtanh.pop %v1163
  %v1168 = vtanh.pop %v1164
  %v1169 = vtanh.pop %v1165
  %v1170 = vtanh.pop %v1166
  %v1171 = vmul.f32 %v1167, %v1144
  %v1172 = vmul.f32 %v1168, %v1146
  %v1173 = vmul.f32 %v1169, %v1148
  %v1174 = vmul.f32 %v1170, %v1150
  %s1175 = scalar_lea.vmem %s0, 512
  %v1176 = vld [vmem:[%s1175] sm:$0xff]
  %v1177 = vld [vmem:[%s1175 + $0x8] sm:$0xff]
  %v1178 = vld [vmem:[%s1175 + $0x10] sm:$0xff]
  %v1179 = vld [vmem:[%s1175 + $0x18] sm:$0xff]
  %v1180 = vld [vmem:[%s1175 + $0x20] sm:$0xff]
  %v1181 = vld [vmem:[%s1175 + $0x28] sm:$0xff]
  %v1182 = vld [vmem:[%s1175 + $0x30] sm:$0xff]
  %v1183 = vld [vmem:[%s1175 + $0x38] sm:$0xff]
  %v1184 = vld [vmem:[%s1175 + $0x40] sm:$0xff]
  %v1185 = vld [vmem:[%s1175 + $0x48] sm:$0xff]
  %v1186 = vld [vmem:[%s1175 + $0x50] sm:$0xff]
  %v1187 = vld [vmem:[%s1175 + $0x58] sm:$0xff]
  %v1188 = vld [vmem:[%s1175 + $0x60] sm:$0xff]
  %v1189 = vld [vmem:[%s1175 + $0x68] sm:$0xff]
  %v1190 = vld [vmem:[%s1175 + $0x70] sm:$0xff]
  %v1191 = vld [vmem:[%s1175 + $0x78] sm:$0xff]
  %1192 = vmatprep.subr.mxu0 0.0
  %1193 = vmatpush1.msra.mxu0 0.0
  %1194 = vmatprep.subr.mxu0 0.0
  %1195 = vmatpush1.msra.mxu0 0.0
  %1196 = vmatprep.subr.mxu0 0.0
  %1197 = vmatpush1.msra.mxu0 0.0
  %1198 = vmatprep.subr.mxu0 0.0
  %1199 = vmatpush1.msra.mxu0 0.0
  %1200 = vmatprep.subr.mxu0 0.0
  %1201 = vmatpush1.msra.mxu0 0.0
  %1202 = vmatprep.subr.mxu0 0.0
  %1203 = vmatpush1.msra.mxu0 0.0
  %1204 = vmatprep.subr.mxu0 0.0
  %1205 = vmatpush1.msra.mxu0 0.0
  %1206 = vmatprep.subr.mxu0 0.0
  %1207 = vmatpush1.msra.mxu0 0.0
  %1208 = vmatprep.subr.mxu0 0.0
  %1209 = vmatpush1.msra.mxu0 0.0
  %1210 = vmatprep.subr.mxu0 0.0
  %1211 = vmatpush1.msra.mxu0 0.0
  %1212 = vmatprep.subr.mxu0 0.0
  %1213 = vmatpush1.msra.mxu0 0.0
  %1214 = vmatprep.subr.mxu0 0.0
  %1215 = vmatpush1.msra.mxu0 0.0
  %1216 = vmatprep.subr.mxu0 0.0
  %1217 = vmatpush1.msra.mxu0 %v1174
  %1218 = vmatprep.subr.mxu0 0.0
  %1219 = vmatpush1.msra.mxu0 %v1173
  %1220 = vmatprep.subr.mxu0 0.0
  %1221 = vmatpush1.msra.mxu0 %v1172
  %1222 = vmatprep.subr.mxu0 0.0
  %1223 = vmatpush1.msra.mxu0 %v1171
  %1224 = vmatprep.subr.mxu0 0.0
  %1225 = vmatpush2.msra.mxu0 0.0
  %1226 = vmatprep.subr.mxu0 0.0
  %1227 = vmatpush2.msra.mxu0 0.0
  %1228 = vmatprep.subr.mxu0 0.0
  %1229 = vmatpush2.msra.mxu0 0.0
  %1230 = vmatprep.subr.mxu0 0.0
  %1231 = vmatpush2.msra.mxu0 0.0
  %1232 = vmatprep.subr.mxu0 0.0
  %1233 = vmatpush2.msra.mxu0 0.0
  %1234 = vmatprep.subr.mxu0 0.0
  %1235 = vmatpush2.msra.mxu0 0.0
  %1236 = vmatprep.subr.mxu0 0.0
  %1237 = vmatpush2.msra.mxu0 0.0
  %1238 = vmatprep.subr.mxu0 0.0
  %1239 = vmatpush2.msra.mxu0 0.0
  %1240 = vmatprep.subr.mxu0 0.0
  %1241 = vmatpush2.msra.mxu0 0.0
  %1242 = vmatprep.subr.mxu0 0.0
  %1243 = vmatpush2.msra.mxu0 0.0
  %1244 = vmatprep.subr.mxu0 0.0
  %1245 = vmatpush2.msra.mxu0 0.0
  %1246 = vmatprep.subr.mxu0 0.0
  %1247 = vmatpush2.msra.mxu0 0.0
  %1248 = vmatprep.subr.mxu0 0.0
  %1249 = vmatpush2.msra.mxu0 0.0
  %1250 = vmatprep.subr.mxu0 0.0
  %1251 = vmatpush2.msra.mxu0 0.0
  %1252 = vmatprep.subr.mxu0 0.0
  %1253 = vmatpush2.msra.mxu0 0.0
  %1254 = vmatprep.subr.mxu0 0.0
  %1255 = vmatpush2.msra.mxu0 0.0
  %1256 = vmatprep.mubr.f32.mxu0 0.0
  %1257 = vmatmul.mubr.f32.gmra.mxu0 %v49
  %v1258 = vpop.f32.mrf.mxu0
  %v1259 = vadd.f32 0.0, %v1258
  %v1260 = vpop.f32.mrf.mxu0
  %1261 = vmatprep.mubr.f32.mxu0 0.0
  %1262 = vmatmul.mubr.f32.gmra.mxu0 %v52
  %v1263 = vpop.f32.mrf.mxu0
  %v1264 = vadd.f32 0.0, %v1263
  %v1265 = vpop.f32.mrf.mxu0
  %1266 = vmatprep.mubr.f32.mxu0 0.0
  %1267 = vmatmul.mubr.f32.gmra.mxu0 %v55
  %v1268 = vpop.f32.mrf.mxu0
  %v1269 = vadd.f32 0.0, %v1268
  %v1270 = vpop.f32.mrf.mxu0
  %1271 = vmatprep.mubr.f32.mxu0 0.0
  %1272 = vmatmul.mubr.f32.gmra.mxu0 %v58
  %v1273 = vpop.f32.mrf.mxu0
  %v1274 = vadd.f32 0.0, %v1273
  %v1275 = vpop.f32.mrf.mxu0
  %1276 = vmatprep.mubr.f32.mxu0 0.0
  %1277 = vmatmul.mubr.f32.gmra.mxu0 %v61
  %v1278 = vpop.f32.mrf.mxu0
  %v1279 = vadd.f32 0.0, %v1278
  %v1280 = vpop.f32.mrf.mxu0
  %1281 = vmatprep.mubr.f32.mxu0 0.0
  %1282 = vmatmul.mubr.f32.gmra.mxu0 %v64
  %v1283 = vpop.f32.mrf.mxu0
  %v1284 = vadd.f32 0.0, %v1283
  %v1285 = vpop.f32.mrf.mxu0
  %1286 = vmatprep.mubr.f32.mxu0 0.0
  %1287 = vmatmul.mubr.f32.gmra.mxu0 %v67
  %v1288 = vpop.f32.mrf.mxu0
  %v1289 = vadd.f32 0.0, %v1288
  %v1290 = vpop.f32.mrf.mxu0
  %1291 = vmatprep.mubr.f32.mxu0 0.0
  %1292 = vmatmul.mubr.f32.gmra.mxu0 %v70
  %v1293 = vpop.f32.mrf.mxu0
  %v1294 = vadd.f32 0.0, %v1293
  %v1295 = vpop.f32.mrf.mxu0
  %1296 = vmatprep.mubr.f32.mxu0 0.0
  %1297 = vmatmul.mubr.f32.gmra.mxu0 %v73
  %v1298 = vpop.f32.mrf.mxu0
  %v1299 = vadd.f32 0.0, %v1298
  %v1300 = vpop.f32.mrf.mxu0
  %1301 = vmatprep.mubr.f32.mxu0 0.0
  %1302 = vmatmul.mubr.f32.gmra.mxu0 %v76
  %v1303 = vpop.f32.mrf.mxu0
  %v1304 = vadd.f32 0.0, %v1303
  %v1305 = vpop.f32.mrf.mxu0
  %1306 = vmatprep.mubr.f32.mxu0 0.0
  %1307 = vmatmul.mubr.f32.gmra.mxu0 %v79
  %v1308 = vpop.f32.mrf.mxu0
  %v1309 = vadd.f32 0.0, %v1308
  %v1310 = vpop.f32.mrf.mxu0
  %1311 = vmatprep.mubr.f32.mxu0 0.0
  %1312 = vmatmul.mubr.f32.gmra.mxu0 %v82
  %v1313 = vpop.f32.mrf.mxu0
  %v1314 = vadd.f32 0.0, %v1313
  %v1315 = vpop.f32.mrf.mxu0
  %1316 = vmatprep.mubr.f32.mxu0 0.0
  %1317 = vmatmul.mubr.f32.gmra.mxu0 %v85
  %v1318 = vpop.f32.mrf.mxu0
  %v1319 = vadd.f32 0.0, %v1318
  %v1320 = vpop.f32.mrf.mxu0
  %1321 = vmatprep.mubr.f32.mxu0 0.0
  %1322 = vmatmul.mubr.f32.gmra.mxu0 %v88
  %v1323 = vpop.f32.mrf.mxu0
  %v1324 = vadd.f32 0.0, %v1323
  %v1325 = vpop.f32.mrf.mxu0
  %1326 = vmatprep.mubr.f32.mxu0 0.0
  %1327 = vmatmul.mubr.f32.gmra.mxu0 %v91
  %v1328 = vpop.f32.mrf.mxu0
  %v1329 = vadd.f32 0.0, %v1328
  %v1330 = vpop.f32.mrf.mxu0
  %1331 = vmatprep.mubr.f32.mxu0 0.0
  %1332 = vmatmul.mubr.f32.gmra.mxu0 %v94
  %v1333 = vpop.f32.mrf.mxu0
  %v1334 = vadd.f32 0.0, %v1333
  %v1335 = vpop.f32.mrf.mxu0
  %1336 = vdwg.mxu0
  %v1337 = vadd.f32 %v1176, %v1259
  %v1338 = vadd.f32 %v1177, %v1264
  %v1339 = vadd.f32 %v1178, %v1269
  %v1340 = vadd.f32 %v1179, %v1274
  %v1341 = vadd.f32 %v1180, %v1279
  %v1342 = vadd.f32 %v1181, %v1284
  %v1343 = vadd.f32 %v1182, %v1289
  %v1344 = vadd.f32 %v1183, %v1294
  %v1345 = vadd.f32 %v1184, %v1299
  %v1346 = vadd.f32 %v1185, %v1304
  %v1347 = vadd.f32 %v1186, %v1309
  %v1348 = vadd.f32 %v1187, %v1314
  %v1349 = vadd.f32 %v1188, %v1319
  %v1350 = vadd.f32 %v1189, %v1324
  %v1351 = vadd.f32 %v1190, %v1329
  %v1352 = vadd.f32 %v1191, %v1334
  %v1353 = vxor.u32 %v1337, 2147483648
  %v1354 = vxor.u32 %v1338, 2147483648
  %v1355 = vxor.u32 %v1339, 2147483648
  %v1356 = vxor.u32 %v1340, 2147483648
  %v1357 = vxor.u32 %v1341, 2147483648
  %v1358 = vxor.u32 %v1342, 2147483648
  %v1359 = vxor.u32 %v1343, 2147483648
  %v1360 = vxor.u32 %v1344, 2147483648
  %v1361 = vxor.u32 %v1345, 2147483648
  %v1362 = vxor.u32 %v1346, 2147483648
  %v1363 = vxor.u32 %v1347, 2147483648
  %v1364 = vxor.u32 %v1348, 2147483648
  %v1365 = vmul.f32 %v1353, 1.442695
  %v1366 = vpow.pop %v1365
  %v1367 = vmul.f32 %v1354, 1.442695
  %v1368 = vpow.pop %v1367
  %v1369 = vmul.f32 %v1355, 1.442695
  %v1370 = vpow.pop %v1369
  %v1371 = vmul.f32 %v1356, 1.442695
  %v1372 = vpow.pop %v1371
  %v1373 = vmul.f32 %v1357, 1.442695
  %v1374 = vpow.pop %v1373
  %v1375 = vmul.f32 %v1358, 1.442695
  %v1376 = vpow.pop %v1375
  %v1377 = vmul.f32 %v1359, 1.442695
  %v1378 = vpow.pop %v1377
  %v1379 = vmul.f32 %v1360, 1.442695
  %v1380 = vpow.pop %v1379
  %v1381 = vmul.f32 %v1361, 1.442695
  %v1382 = vpow.pop %v1381
  %v1383 = vmul.f32 %v1362, 1.442695
  %v1384 = vpow.pop %v1383
  %v1385 = vmul.f32 %v1363, 1.442695
  %v1386 = vpow.pop %v1385
  %v1387 = vmul.f32 %v1364, 1.442695
  %v1388 = vpow.pop %v1387
  %v1389 = vadd.f32 %v1366, 1.0
  %v1390 = vadd.f32 %v1368, 1.0
  %v1391 = vadd.f32 %v1370, 1.0
  %v1392 = vadd.f32 %v1372, 1.0
  %v1393 = vadd.f32 %v1374, 1.0
  %v1394 = vadd.f32 %v1376, 1.0
  %v1395 = vadd.f32 %v1378, 1.0
  %v1396 = vadd.f32 %v1380, 1.0
  %v1397 = vadd.f32 %v1382, 1.0
  %v1398 = vadd.f32 %v1384, 1.0
  %v1399 = vadd.f32 %v1386, 1.0
  %v1400 = vadd.f32 %v1388, 1.0
  %v1401 = vrcp.pop %v1389
  %v1402 = vmul.f32 1.0, %v1401
  %v1403 = vrcp.pop %v1390
  %v1404 = vmul.f32 1.0, %v1403
  %v1405 = vrcp.pop %v1391
  %v1406 = vmul.f32 1.0, %v1405
  %v1407 = vrcp.pop %v1392
  %v1408 = vmul.f32 1.0, %v1407
  %v1409 = vrcp.pop %v1393
  %v1410 = vmul.f32 1.0, %v1409
  %v1411 = vrcp.pop %v1394
  %v1412 = vmul.f32 1.0, %v1411
  %v1413 = vrcp.pop %v1395
  %v1414 = vmul.f32 1.0, %v1413
  %v1415 = vrcp.pop %v1396
  %v1416 = vmul.f32 1.0, %v1415
  %v1417 = vrcp.pop %v1397
  %v1418 = vmul.f32 1.0, %v1417
  %v1419 = vrcp.pop %v1398
  %v1420 = vmul.f32 1.0, %v1419
  %v1421 = vrcp.pop %v1399
  %v1422 = vmul.f32 1.0, %v1421
  %v1423 = vrcp.pop %v1400
  %v1424 = vmul.f32 1.0, %v1423
  %v1425 = vtanh.pop %v1349
  %v1426 = vtanh.pop %v1350
  %v1427 = vtanh.pop %v1351
  %v1428 = vtanh.pop %v1352
  %v1429 = vmul.f32 %v1425, %v1402
  %v1430 = vmul.f32 %v1426, %v1404
  %v1431 = vmul.f32 %v1427, %v1406
  %v1432 = vmul.f32 %v1428, %v1408
  %v1433 = vmul.f32 %v1163, %v1410
  %v1434 = vmul.f32 %v1164, %v1412
  %v1435 = vmul.f32 %v1165, %v1414
  %v1436 = vmul.f32 %v1166, %v1416
  %v1437 = vadd.f32 %v1429, %v1433
  %v1438 = vadd.f32 %v1430, %v1434
  %v1439 = vadd.f32 %v1431, %v1435
  %v1440 = vadd.f32 %v1432, %v1436
  %v1441 = vtanh.pop %v1437
  %v1442 = vtanh.pop %v1438
  %v1443 = vtanh.pop %v1439
  %v1444 = vtanh.pop %v1440
  %v1445 = vmul.f32 %v1441, %v1418
  %v1446 = vmul.f32 %v1442, %v1420
  %v1447 = vmul.f32 %v1443, %v1422
  %v1448 = vmul.f32 %v1444, %v1424
  %s1449 = scalar_lea.vmem %s0, 640
  %v1450 = vld [vmem:[%s1449] sm:$0xff]
  %v1451 = vld [vmem:[%s1449 + $0x8] sm:$0xff]
  %v1452 = vld [vmem:[%s1449 + $0x10] sm:$0xff]
  %v1453 = vld [vmem:[%s1449 + $0x18] sm:$0xff]
  %v1454 = vld [vmem:[%s1449 + $0x20] sm:$0xff]
  %v1455 = vld [vmem:[%s1449 + $0x28] sm:$0xff]
  %v1456 = vld [vmem:[%s1449 + $0x30] sm:$0xff]
  %v1457 = vld [vmem:[%s1449 + $0x38] sm:$0xff]
  %v1458 = vld [vmem:[%s1449 + $0x40] sm:$0xff]
  %v1459 = vld [vmem:[%s1449 + $0x48] sm:$0xff]
  %v1460 = vld [vmem:[%s1449 + $0x50] sm:$0xff]
  %v1461 = vld [vmem:[%s1449 + $0x58] sm:$0xff]
  %v1462 = vld [vmem:[%s1449 + $0x60] sm:$0xff]
  %v1463 = vld [vmem:[%s1449 + $0x68] sm:$0xff]
  %v1464 = vld [vmem:[%s1449 + $0x70] sm:$0xff]
  %v1465 = vld [vmem:[%s1449 + $0x78] sm:$0xff]
  %1466 = vmatprep.subr.mxu0 0.0
  %1467 = vmatpush1.msra.mxu0 0.0
  %1468 = vmatprep.subr.mxu0 0.0
  %1469 = vmatpush1.msra.mxu0 0.0
  %1470 = vmatprep.subr.mxu0 0.0
  %1471 = vmatpush1.msra.mxu0 0.0
  %1472 = vmatprep.subr.mxu0 0.0
  %1473 = vmatpush1.msra.mxu0 0.0
  %1474 = vmatprep.subr.mxu0 0.0
  %1475 = vmatpush1.msra.mxu0 0.0
  %1476 = vmatprep.subr.mxu0 0.0
  %1477 = vmatpush1.msra.mxu0 0.0
  %1478 = vmatprep.subr.mxu0 0.0
  %1479 = vmatpush1.msra.mxu0 0.0
  %1480 = vmatprep.subr.mxu0 0.0
  %1481 = vmatpush1.msra.mxu0 0.0
  %1482 = vmatprep.subr.mxu0 0.0
  %1483 = vmatpush1.msra.mxu0 0.0
  %1484 = vmatprep.subr.mxu0 0.0
  %1485 = vmatpush1.msra.mxu0 0.0
  %1486 = vmatprep.subr.mxu0 0.0
  %1487 = vmatpush1.msra.mxu0 0.0
  %1488 = vmatprep.subr.mxu0 0.0
  %1489 = vmatpush1.msra.mxu0 0.0
  %1490 = vmatprep.subr.mxu0 0.0
  %1491 = vmatpush1.msra.mxu0 %v1448
  %1492 = vmatprep.subr.mxu0 0.0
  %1493 = vmatpush1.msra.mxu0 %v1447
  %1494 = vmatprep.subr.mxu0 0.0
  %1495 = vmatpush1.msra.mxu0 %v1446
  %1496 = vmatprep.subr.mxu0 0.0
  %1497 = vmatpush1.msra.mxu0 %v1445
  %1498 = vmatprep.subr.mxu0 0.0
  %1499 = vmatpush2.msra.mxu0 0.0
  %1500 = vmatprep.subr.mxu0 0.0
  %1501 = vmatpush2.msra.mxu0 0.0
  %1502 = vmatprep.subr.mxu0 0.0
  %1503 = vmatpush2.msra.mxu0 0.0
  %1504 = vmatprep.subr.mxu0 0.0
  %1505 = vmatpush2.msra.mxu0 0.0
  %1506 = vmatprep.subr.mxu0 0.0
  %1507 = vmatpush2.msra.mxu0 0.0
  %1508 = vmatprep.subr.mxu0 0.0
  %1509 = vmatpush2.msra.mxu0 0.0
  %1510 = vmatprep.subr.mxu0 0.0
  %1511 = vmatpush2.msra.mxu0 0.0
  %1512 = vmatprep.subr.mxu0 0.0
  %1513 = vmatpush2.msra.mxu0 0.0
  %1514 = vmatprep.subr.mxu0 0.0
  %1515 = vmatpush2.msra.mxu0 0.0
  %1516 = vmatprep.subr.mxu0 0.0
  %1517 = vmatpush2.msra.mxu0 0.0
  %1518 = vmatprep.subr.mxu0 0.0
  %1519 = vmatpush2.msra.mxu0 0.0
  %1520 = vmatprep.subr.mxu0 0.0
  %1521 = vmatpush2.msra.mxu0 0.0
  %1522 = vmatprep.subr.mxu0 0.0
  %1523 = vmatpush2.msra.mxu0 0.0
  %1524 = vmatprep.subr.mxu0 0.0
  %1525 = vmatpush2.msra.mxu0 0.0
  %1526 = vmatprep.subr.mxu0 0.0
  %1527 = vmatpush2.msra.mxu0 0.0
  %1528 = vmatprep.subr.mxu0 0.0
  %1529 = vmatpush2.msra.mxu0 0.0
  %1530 = vmatprep.mubr.f32.mxu0 0.0
  %1531 = vmatmul.mubr.f32.gmra.mxu0 %v49
  %v1532 = vpop.f32.mrf.mxu0
  %v1533 = vadd.f32 0.0, %v1532
  %v1534 = vpop.f32.mrf.mxu0
  %1535 = vmatprep.mubr.f32.mxu0 0.0
  %1536 = vmatmul.mubr.f32.gmra.mxu0 %v52
  %v1537 = vpop.f32.mrf.mxu0
  %v1538 = vadd.f32 0.0, %v1537
  %v1539 = vpop.f32.mrf.mxu0
  %1540 = vmatprep.mubr.f32.mxu0 0.0
  %1541 = vmatmul.mubr.f32.gmra.mxu0 %v55
  %v1542 = vpop.f32.mrf.mxu0
  %v1543 = vadd.f32 0.0, %v1542
  %v1544 = vpop.f32.mrf.mxu0
  %1545 = vmatprep.mubr.f32.mxu0 0.0
  %1546 = vmatmul.mubr.f32.gmra.mxu0 %v58
  %v1547 = vpop.f32.mrf.mxu0
  %v1548 = vadd.f32 0.0, %v1547
  %v1549 = vpop.f32.mrf.mxu0
  %1550 = vmatprep.mubr.f32.mxu0 0.0
  %1551 = vmatmul.mubr.f32.gmra.mxu0 %v61
  %v1552 = vpop.f32.mrf.mxu0
  %v1553 = vadd.f32 0.0, %v1552
  %v1554 = vpop.f32.mrf.mxu0
  %1555 = vmatprep.mubr.f32.mxu0 0.0
  %1556 = vmatmul.mubr.f32.gmra.mxu0 %v64
  %v1557 = vpop.f32.mrf.mxu0
  %v1558 = vadd.f32 0.0, %v1557
  %v1559 = vpop.f32.mrf.mxu0
  %1560 = vmatprep.mubr.f32.mxu0 0.0
  %1561 = vmatmul.mubr.f32.gmra.mxu0 %v67
  %v1562 = vpop.f32.mrf.mxu0
  %v1563 = vadd.f32 0.0, %v1562
  %v1564 = vpop.f32.mrf.mxu0
  %1565 = vmatprep.mubr.f32.mxu0 0.0
  %1566 = vmatmul.mubr.f32.gmra.mxu0 %v70
  %v1567 = vpop.f32.mrf.mxu0
  %v1568 = vadd.f32 0.0, %v1567
  %v1569 = vpop.f32.mrf.mxu0
  %1570 = vmatprep.mubr.f32.mxu0 0.0
  %1571 = vmatmul.mubr.f32.gmra.mxu0 %v73
  %v1572 = vpop.f32.mrf.mxu0
  %v1573 = vadd.f32 0.0, %v1572
  %v1574 = vpop.f32.mrf.mxu0
  %1575 = vmatprep.mubr.f32.mxu0 0.0
  %1576 = vmatmul.mubr.f32.gmra.mxu0 %v76
  %v1577 = vpop.f32.mrf.mxu0
  %v1578 = vadd.f32 0.0, %v1577
  %v1579 = vpop.f32.mrf.mxu0
  %1580 = vmatprep.mubr.f32.mxu0 0.0
  %1581 = vmatmul.mubr.f32.gmra.mxu0 %v79
  %v1582 = vpop.f32.mrf.mxu0
  %v1583 = vadd.f32 0.0, %v1582
  %v1584 = vpop.f32.mrf.mxu0
  %1585 = vmatprep.mubr.f32.mxu0 0.0
  %1586 = vmatmul.mubr.f32.gmra.mxu0 %v82
  %v1587 = vpop.f32.mrf.mxu0
  %v1588 = vadd.f32 0.0, %v1587
  %v1589 = vpop.f32.mrf.mxu0
  %1590 = vmatprep.mubr.f32.mxu0 0.0
  %1591 = vmatmul.mubr.f32.gmra.mxu0 %v85
  %v1592 = vpop.f32.mrf.mxu0
  %v1593 = vadd.f32 0.0, %v1592
  %v1594 = vpop.f32.mrf.mxu0
  %1595 = vmatprep.mubr.f32.mxu0 0.0
  %1596 = vmatmul.mubr.f32.gmra.mxu0 %v88
  %v1597 = vpop.f32.mrf.mxu0
  %v1598 = vadd.f32 0.0, %v1597
  %v1599 = vpop.f32.mrf.mxu0
  %1600 = vmatprep.mubr.f32.mxu0 0.0
  %1601 = vmatmul.mubr.f32.gmra.mxu0 %v91
  %v1602 = vpop.f32.mrf.mxu0
  %v1603 = vadd.f32 0.0, %v1602
  %v1604 = vpop.f32.mrf.mxu0
  %1605 = vmatprep.mubr.f32.mxu0 0.0
  %1606 = vmatmul.mubr.f32.gmra.mxu0 %v94
  %v1607 = vpop.f32.mrf.mxu0
  %v1608 = vadd.f32 0.0, %v1607
  %v1609 = vpop.f32.mrf.mxu0
  %1610 = vdwg.mxu0
  %v1611 = vadd.f32 %v1450, %v1533
  %v1612 = vadd.f32 %v1451, %v1538
  %v1613 = vadd.f32 %v1452, %v1543
  %v1614 = vadd.f32 %v1453, %v1548
  %v1615 = vadd.f32 %v1454, %v1553
  %v1616 = vadd.f32 %v1455, %v1558
  %v1617 = vadd.f32 %v1456, %v1563
  %v1618 = vadd.f32 %v1457, %v1568
  %v1619 = vadd.f32 %v1458, %v1573
  %v1620 = vadd.f32 %v1459, %v1578
  %v1621 = vadd.f32 %v1460, %v1583
  %v1622 = vadd.f32 %v1461, %v1588
  %v1623 = vadd.f32 %v1462, %v1593
  %v1624 = vadd.f32 %v1463, %v1598
  %v1625 = vadd.f32 %v1464, %v1603
  %v1626 = vadd.f32 %v1465, %v1608
  %v1627 = vxor.u32 %v1611, 2147483648
  %v1628 = vxor.u32 %v1612, 2147483648
  %v1629 = vxor.u32 %v1613, 2147483648
  %v1630 = vxor.u32 %v1614, 2147483648
  %v1631 = vxor.u32 %v1615, 2147483648
  %v1632 = vxor.u32 %v1616, 2147483648
  %v1633 = vxor.u32 %v1617, 2147483648
  %v1634 = vxor.u32 %v1618, 2147483648
  %v1635 = vxor.u32 %v1619, 2147483648
  %v1636 = vxor.u32 %v1620, 2147483648
  %v1637 = vxor.u32 %v1621, 2147483648
  %v1638 = vxor.u32 %v1622, 2147483648
  %v1639 = vmul.f32 %v1627, 1.442695
  %v1640 = vpow.pop %v1639
  %v1641 = vmul.f32 %v1628, 1.442695
  %v1642 = vpow.pop %v1641
  %v1643 = vmul.f32 %v1629, 1.442695
  %v1644 = vpow.pop %v1643
  %v1645 = vmul.f32 %v1630, 1.442695
  %v1646 = vpow.pop %v1645
  %v1647 = vmul.f32 %v1631, 1.442695
  %v1648 = vpow.pop %v1647
  %v1649 = vmul.f32 %v1632, 1.442695
  %v1650 = vpow.pop %v1649
  %v1651 = vmul.f32 %v1633, 1.442695
  %v1652 = vpow.pop %v1651
  %v1653 = vmul.f32 %v1634, 1.442695
  %v1654 = vpow.pop %v1653
  %v1655 = vmul.f32 %v1635, 1.442695
  %v1656 = vpow.pop %v1655
  %v1657 = vmul.f32 %v1636, 1.442695
  %v1658 = vpow.pop %v1657
  %v1659 = vmul.f32 %v1637, 1.442695
  %v1660 = vpow.pop %v1659
  %v1661 = vmul.f32 %v1638, 1.442695
  %v1662 = vpow.pop %v1661
  %v1663 = vadd.f32 %v1640, 1.0
  %v1664 = vadd.f32 %v1642, 1.0
  %v1665 = vadd.f32 %v1644, 1.0
  %v1666 = vadd.f32 %v1646, 1.0
  %v1667 = vadd.f32 %v1648, 1.0
  %v1668 = vadd.f32 %v1650, 1.0
  %v1669 = vadd.f32 %v1652, 1.0
  %v1670 = vadd.f32 %v1654, 1.0
  %v1671 = vadd.f32 %v1656, 1.0
  %v1672 = vadd.f32 %v1658, 1.0
  %v1673 = vadd.f32 %v1660, 1.0
  %v1674 = vadd.f32 %v1662, 1.0
  %v1675 = vrcp.pop %v1663
  %v1676 = vmul.f32 1.0, %v1675
  %v1677 = vrcp.pop %v1664
  %v1678 = vmul.f32 1.0, %v1677
  %v1679 = vrcp.pop %v1665
  %v1680 = vmul.f32 1.0, %v1679
  %v1681 = vrcp.pop %v1666
  %v1682 = vmul.f32 1.0, %v1681
  %v1683 = vrcp.pop %v1667
  %v1684 = vmul.f32 1.0, %v1683
  %v1685 = vrcp.pop %v1668
  %v1686 = vmul.f32 1.0, %v1685
  %v1687 = vrcp.pop %v1669
  %v1688 = vmul.f32 1.0, %v1687
  %v1689 = vrcp.pop %v1670
  %v1690 = vmul.f32 1.0, %v1689
  %v1691 = vrcp.pop %v1671
  %v1692 = vmul.f32 1.0, %v1691
  %v1693 = vrcp.pop %v1672
  %v1694 = vmul.f32 1.0, %v1693
  %v1695 = vrcp.pop %v1673
  %v1696 = vmul.f32 1.0, %v1695
  %v1697 = vrcp.pop %v1674
  %v1698 = vmul.f32 1.0, %v1697
  %v1699 = vtanh.pop %v1623
  %v1700 = vtanh.pop %v1624
  %v1701 = vtanh.pop %v1625
  %v1702 = vtanh.pop %v1626
  %v1703 = vmul.f32 %v1699, %v1676
  %v1704 = vmul.f32 %v1700, %v1678
  %v1705 = vmul.f32 %v1701, %v1680
  %v1706 = vmul.f32 %v1702, %v1682
  %v1707 = vmul.f32 %v1437, %v1684
  %v1708 = vmul.f32 %v1438, %v1686
  %v1709 = vmul.f32 %v1439, %v1688
  %v1710 = vmul.f32 %v1440, %v1690
  %v1711 = vadd.f32 %v1703, %v1707
  %v1712 = vadd.f32 %v1704, %v1708
  %v1713 = vadd.f32 %v1705, %v1709
  %v1714 = vadd.f32 %v1706, %v1710
  %v1715 = vtanh.pop %v1711
  %v1716 = vtanh.pop %v1712
  %v1717 = vtanh.pop %v1713
  %v1718 = vtanh.pop %v1714
  %v1719 = vmul.f32 %v1715, %v1692
  %v1720 = vmul.f32 %v1716, %v1694
  %v1721 = vmul.f32 %v1717, %v1696
  %v1722 = vmul.f32 %v1718, %v1698
  %s1723 = scalar_lea.vmem %s0, 768
  %v1724 = vld [vmem:[%s1723] sm:$0xff]
  %v1725 = vld [vmem:[%s1723 + $0x8] sm:$0xff]
  %v1726 = vld [vmem:[%s1723 + $0x10] sm:$0xff]
  %v1727 = vld [vmem:[%s1723 + $0x18] sm:$0xff]
  %v1728 = vld [vmem:[%s1723 + $0x20] sm:$0xff]
  %v1729 = vld [vmem:[%s1723 + $0x28] sm:$0xff]
  %v1730 = vld [vmem:[%s1723 + $0x30] sm:$0xff]
  %v1731 = vld [vmem:[%s1723 + $0x38] sm:$0xff]
  %v1732 = vld [vmem:[%s1723 + $0x40] sm:$0xff]
  %v1733 = vld [vmem:[%s1723 + $0x48] sm:$0xff]
  %v1734 = vld [vmem:[%s1723 + $0x50] sm:$0xff]
  %v1735 = vld [vmem:[%s1723 + $0x58] sm:$0xff]
  %v1736 = vld [vmem:[%s1723 + $0x60] sm:$0xff]
  %v1737 = vld [vmem:[%s1723 + $0x68] sm:$0xff]
  %v1738 = vld [vmem:[%s1723 + $0x70] sm:$0xff]
  %v1739 = vld [vmem:[%s1723 + $0x78] sm:$0xff]
  %1740 = vmatprep.subr.mxu0 0.0
  %1741 = vmatpush1.msra.mxu0 0.0
  %1742 = vmatprep.subr.mxu0 0.0
  %1743 = vmatpush1.msra.mxu0 0.0
  %1744 = vmatprep.subr.mxu0 0.0
  %1745 = vmatpush1.msra.mxu0 0.0
  %1746 = vmatprep.subr.mxu0 0.0
  %1747 = vmatpush1.msra.mxu0 0.0
  %1748 = vmatprep.subr.mxu0 0.0
  %1749 = vmatpush1.msra.mxu0 0.0
  %1750 = vmatprep.subr.mxu0 0.0
  %1751 = vmatpush1.msra.mxu0 0.0
  %1752 = vmatprep.subr.mxu0 0.0
  %1753 = vmatpush1.msra.mxu0 0.0
  %1754 = vmatprep.subr.mxu0 0.0
  %1755 = vmatpush1.msra.mxu0 0.0
  %1756 = vmatprep.subr.mxu0 0.0
  %1757 = vmatpush1.msra.mxu0 0.0
  %1758 = vmatprep.subr.mxu0 0.0
  %1759 = vmatpush1.msra.mxu0 0.0
  %1760 = vmatprep.subr.mxu0 0.0
  %1761 = vmatpush1.msra.mxu0 0.0
  %1762 = vmatprep.subr.mxu0 0.0
  %1763 = vmatpush1.msra.mxu0 0.0
  %1764 = vmatprep.subr.mxu0 0.0
  %1765 = vmatpush1.msra.mxu0 %v1722
  %1766 = vmatprep.subr.mxu0 0.0
  %1767 = vmatpush1.msra.mxu0 %v1721
  %1768 = vmatprep.subr.mxu0 0.0
  %1769 = vmatpush1.msra.mxu0 %v1720
  %1770 = vmatprep.subr.mxu0 0.0
  %1771 = vmatpush1.msra.mxu0 %v1719
  %1772 = vmatprep.subr.mxu0 0.0
  %1773 = vmatpush2.msra.mxu0 0.0
  %1774 = vmatprep.subr.mxu0 0.0
  %1775 = vmatpush2.msra.mxu0 0.0
  %1776 = vmatprep.subr.mxu0 0.0
  %1777 = vmatpush2.msra.mxu0 0.0
  %1778 = vmatprep.subr.mxu0 0.0
  %1779 = vmatpush2.msra.mxu0 0.0
  %1780 = vmatprep.subr.mxu0 0.0
  %1781 = vmatpush2.msra.mxu0 0.0
  %1782 = vmatprep.subr.mxu0 0.0
  %1783 = vmatpush2.msra.mxu0 0.0
  %1784 = vmatprep.subr.mxu0 0.0
  %1785 = vmatpush2.msra.mxu0 0.0
  %1786 = vmatprep.subr.mxu0 0.0
  %1787 = vmatpush2.msra.mxu0 0.0
  %1788 = vmatprep.subr.mxu0 0.0
  %1789 = vmatpush2.msra.mxu0 0.0
  %1790 = vmatprep.subr.mxu0 0.0
  %1791 = vmatpush2.msra.mxu0 0.0
  %1792 = vmatprep.subr.mxu0 0.0
  %1793 = vmatpush2.msra.mxu0 0.0
  %1794 = vmatprep.subr.mxu0 0.0
  %1795 = vmatpush2.msra.mxu0 0.0
  %1796 = vmatprep.subr.mxu0 0.0
  %1797 = vmatpush2.msra.mxu0 0.0
  %1798 = vmatprep.subr.mxu0 0.0
  %1799 = vmatpush2.msra.mxu0 0.0
  %1800 = vmatprep.subr.mxu0 0.0
  %1801 = vmatpush2.msra.mxu0 0.0
  %1802 = vmatprep.subr.mxu0 0.0
  %1803 = vmatpush2.msra.mxu0 0.0
  %1804 = vmatprep.mubr.f32.mxu0 0.0
  %1805 = vmatmul.mubr.f32.gmra.mxu0 %v49
  %v1806 = vpop.f32.mrf.mxu0
  %v1807 = vadd.f32 0.0, %v1806
  %v1808 = vpop.f32.mrf.mxu0
  %1809 = vmatprep.mubr.f32.mxu0 0.0
  %1810 = vmatmul.mubr.f32.gmra.mxu0 %v52
  %v1811 = vpop.f32.mrf.mxu0
  %v1812 = vadd.f32 0.0, %v1811
  %v1813 = vpop.f32.mrf.mxu0
  %1814 = vmatprep.mubr.f32.mxu0 0.0
  %1815 = vmatmul.mubr.f32.gmra.mxu0 %v55
  %v1816 = vpop.f32.mrf.mxu0
  %v1817 = vadd.f32 0.0, %v1816
  %v1818 = vpop.f32.mrf.mxu0
  %1819 = vmatprep.mubr.f32.mxu0 0.0
  %1820 = vmatmul.mubr.f32.gmra.mxu0 %v58
  %v1821 = vpop.f32.mrf.mxu0
  %v1822 = vadd.f32 0.0, %v1821
  %v1823 = vpop.f32.mrf.mxu0
  %1824 = vmatprep.mubr.f32.mxu0 0.0
  %1825 = vmatmul.mubr.f32.gmra.mxu0 %v61
  %v1826 = vpop.f32.mrf.mxu0
  %v1827 = vadd.f32 0.0, %v1826
  %v1828 = vpop.f32.mrf.mxu0
  %1829 = vmatprep.mubr.f32.mxu0 0.0
  %1830 = vmatmul.mubr.f32.gmra.mxu0 %v64
  %v1831 = vpop.f32.mrf.mxu0
  %v1832 = vadd.f32 0.0, %v1831
  %v1833 = vpop.f32.mrf.mxu0
  %1834 = vmatprep.mubr.f32.mxu0 0.0
  %1835 = vmatmul.mubr.f32.gmra.mxu0 %v67
  %v1836 = vpop.f32.mrf.mxu0
  %v1837 = vadd.f32 0.0, %v1836
  %v1838 = vpop.f32.mrf.mxu0
  %1839 = vmatprep.mubr.f32.mxu0 0.0
  %1840 = vmatmul.mubr.f32.gmra.mxu0 %v70
  %v1841 = vpop.f32.mrf.mxu0
  %v1842 = vadd.f32 0.0, %v1841
  %v1843 = vpop.f32.mrf.mxu0
  %1844 = vmatprep.mubr.f32.mxu0 0.0
  %1845 = vmatmul.mubr.f32.gmra.mxu0 %v73
  %v1846 = vpop.f32.mrf.mxu0
  %v1847 = vadd.f32 0.0, %v1846
  %v1848 = vpop.f32.mrf.mxu0
  %1849 = vmatprep.mubr.f32.mxu0 0.0
  %1850 = vmatmul.mubr.f32.gmra.mxu0 %v76
  %v1851 = vpop.f32.mrf.mxu0
  %v1852 = vadd.f32 0.0, %v1851
  %v1853 = vpop.f32.mrf.mxu0
  %1854 = vmatprep.mubr.f32.mxu0 0.0
  %1855 = vmatmul.mubr.f32.gmra.mxu0 %v79
  %v1856 = vpop.f32.mrf.mxu0
  %v1857 = vadd.f32 0.0, %v1856
  %v1858 = vpop.f32.mrf.mxu0
  %1859 = vmatprep.mubr.f32.mxu0 0.0
  %1860 = vmatmul.mubr.f32.gmra.mxu0 %v82
  %v1861 = vpop.f32.mrf.mxu0
  %v1862 = vadd.f32 0.0, %v1861
  %v1863 = vpop.f32.mrf.mxu0
  %1864 = vmatprep.mubr.f32.mxu0 0.0
  %1865 = vmatmul.mubr.f32.gmra.mxu0 %v85
  %v1866 = vpop.f32.mrf.mxu0
  %v1867 = vadd.f32 0.0, %v1866
  %v1868 = vpop.f32.mrf.mxu0
  %1869 = vmatprep.mubr.f32.mxu0 0.0
  %1870 = vmatmul.mubr.f32.gmra.mxu0 %v88
  %v1871 = vpop.f32.mrf.mxu0
  %v1872 = vadd.f32 0.0, %v1871
  %v1873 = vpop.f32.mrf.mxu0
  %1874 = vmatprep.mubr.f32.mxu0 0.0
  %1875 = vmatmul.mubr.f32.gmra.mxu0 %v91
  %v1876 = vpop.f32.mrf.mxu0
  %v1877 = vadd.f32 0.0, %v1876
  %v1878 = vpop.f32.mrf.mxu0
  %1879 = vmatprep.mubr.f32.mxu0 0.0
  %1880 = vmatmul.mubr.f32.gmra.mxu0 %v94
  %v1881 = vpop.f32.mrf.mxu0
  %v1882 = vadd.f32 0.0, %v1881
  %v1883 = vpop.f32.mrf.mxu0
  %1884 = vdwg.mxu0
  %v1885 = vadd.f32 %v1724, %v1807
  %v1886 = vadd.f32 %v1725, %v1812
  %v1887 = vadd.f32 %v1726, %v1817
  %v1888 = vadd.f32 %v1727, %v1822
  %v1889 = vadd.f32 %v1728, %v1827
  %v1890 = vadd.f32 %v1729, %v1832
  %v1891 = vadd.f32 %v1730, %v1837
  %v1892 = vadd.f32 %v1731, %v1842
  %v1893 = vadd.f32 %v1732, %v1847
  %v1894 = vadd.f32 %v1733, %v1852
  %v1895 = vadd.f32 %v1734, %v1857
  %v1896 = vadd.f32 %v1735, %v1862
  %v1897 = vadd.f32 %v1736, %v1867
  %v1898 = vadd.f32 %v1737, %v1872
  %v1899 = vadd.f32 %v1738, %v1877
  %v1900 = vadd.f32 %v1739, %v1882
  %v1901 = vxor.u32 %v1885, 2147483648
  %v1902 = vxor.u32 %v1886, 2147483648
  %v1903 = vxor.u32 %v1887, 2147483648
  %v1904 = vxor.u32 %v1888, 2147483648
  %v1905 = vxor.u32 %v1889, 2147483648
  %v1906 = vxor.u32 %v1890, 2147483648
  %v1907 = vxor.u32 %v1891, 2147483648
  %v1908 = vxor.u32 %v1892, 2147483648
  %v1909 = vxor.u32 %v1893, 2147483648
  %v1910 = vxor.u32 %v1894, 2147483648
  %v1911 = vxor.u32 %v1895, 2147483648
  %v1912 = vxor.u32 %v1896, 2147483648
  %v1913 = vmul.f32 %v1901, 1.442695
  %v1914 = vpow.pop %v1913
  %v1915 = vmul.f32 %v1902, 1.442695
  %v1916 = vpow.pop %v1915
  %v1917 = vmul.f32 %v1903, 1.442695
  %v1918 = vpow.pop %v1917
  %v1919 = vmul.f32 %v1904, 1.442695
  %v1920 = vpow.pop %v1919
  %v1921 = vmul.f32 %v1905, 1.442695
  %v1922 = vpow.pop %v1921
  %v1923 = vmul.f32 %v1906, 1.442695
  %v1924 = vpow.pop %v1923
  %v1925 = vmul.f32 %v1907, 1.442695
  %v1926 = vpow.pop %v1925
  %v1927 = vmul.f32 %v1908, 1.442695
  %v1928 = vpow.pop %v1927
  %v1929 = vmul.f32 %v1909, 1.442695
  %v1930 = vpow.pop %v1929
  %v1931 = vmul.f32 %v1910, 1.442695
  %v1932 = vpow.pop %v1931
  %v1933 = vmul.f32 %v1911, 1.442695
  %v1934 = vpow.pop %v1933
  %v1935 = vmul.f32 %v1912, 1.442695
  %v1936 = vpow.pop %v1935
  %v1937 = vadd.f32 %v1914, 1.0
  %v1938 = vadd.f32 %v1916, 1.0
  %v1939 = vadd.f32 %v1918, 1.0
  %v1940 = vadd.f32 %v1920, 1.0
  %v1941 = vadd.f32 %v1922, 1.0
  %v1942 = vadd.f32 %v1924, 1.0
  %v1943 = vadd.f32 %v1926, 1.0
  %v1944 = vadd.f32 %v1928, 1.0
  %v1945 = vadd.f32 %v1930, 1.0
  %v1946 = vadd.f32 %v1932, 1.0
  %v1947 = vadd.f32 %v1934, 1.0
  %v1948 = vadd.f32 %v1936, 1.0
  %v1949 = vrcp.pop %v1937
  %v1950 = vmul.f32 1.0, %v1949
  %v1951 = vrcp.pop %v1938
  %v1952 = vmul.f32 1.0, %v1951
  %v1953 = vrcp.pop %v1939
  %v1954 = vmul.f32 1.0, %v1953
  %v1955 = vrcp.pop %v1940
  %v1956 = vmul.f32 1.0, %v1955
  %v1957 = vrcp.pop %v1941
  %v1958 = vmul.f32 1.0, %v1957
  %v1959 = vrcp.pop %v1942
  %v1960 = vmul.f32 1.0, %v1959
  %v1961 = vrcp.pop %v1943
  %v1962 = vmul.f32 1.0, %v1961
  %v1963 = vrcp.pop %v1944
  %v1964 = vmul.f32 1.0, %v1963
  %v1965 = vrcp.pop %v1945
  %v1966 = vmul.f32 1.0, %v1965
  %v1967 = vrcp.pop %v1946
  %v1968 = vmul.f32 1.0, %v1967
  %v1969 = vrcp.pop %v1947
  %v1970 = vmul.f32 1.0, %v1969
  %v1971 = vrcp.pop %v1948
  %v1972 = vmul.f32 1.0, %v1971
  %v1973 = vtanh.pop %v1897
  %v1974 = vtanh.pop %v1898
  %v1975 = vtanh.pop %v1899
  %v1976 = vtanh.pop %v1900
  %v1977 = vmul.f32 %v1973, %v1950
  %v1978 = vmul.f32 %v1974, %v1952
  %v1979 = vmul.f32 %v1975, %v1954
  %v1980 = vmul.f32 %v1976, %v1956
  %v1981 = vmul.f32 %v1711, %v1958
  %v1982 = vmul.f32 %v1712, %v1960
  %v1983 = vmul.f32 %v1713, %v1962
  %v1984 = vmul.f32 %v1714, %v1964
  %v1985 = vadd.f32 %v1977, %v1981
  %v1986 = vadd.f32 %v1978, %v1982
  %v1987 = vadd.f32 %v1979, %v1983
  %v1988 = vadd.f32 %v1980, %v1984
  %v1989 = vtanh.pop %v1985
  %v1990 = vtanh.pop %v1986
  %v1991 = vtanh.pop %v1987
  %v1992 = vtanh.pop %v1988
  %v1993 = vmul.f32 %v1989, %v1966
  %v1994 = vmul.f32 %v1990, %v1968
  %v1995 = vmul.f32 %v1991, %v1970
  %v1996 = vmul.f32 %v1992, %v1972
  %s1997 = scalar_lea.vmem %s0, 896
  %v1998 = vld [vmem:[%s1997] sm:$0xff]
  %v1999 = vld [vmem:[%s1997 + $0x8] sm:$0xff]
  %v2000 = vld [vmem:[%s1997 + $0x10] sm:$0xff]
  %v2001 = vld [vmem:[%s1997 + $0x18] sm:$0xff]
  %v2002 = vld [vmem:[%s1997 + $0x20] sm:$0xff]
  %v2003 = vld [vmem:[%s1997 + $0x28] sm:$0xff]
  %v2004 = vld [vmem:[%s1997 + $0x30] sm:$0xff]
  %v2005 = vld [vmem:[%s1997 + $0x38] sm:$0xff]
  %v2006 = vld [vmem:[%s1997 + $0x40] sm:$0xff]
  %v2007 = vld [vmem:[%s1997 + $0x48] sm:$0xff]
  %v2008 = vld [vmem:[%s1997 + $0x50] sm:$0xff]
  %v2009 = vld [vmem:[%s1997 + $0x58] sm:$0xff]
  %v2010 = vld [vmem:[%s1997 + $0x60] sm:$0xff]
  %v2011 = vld [vmem:[%s1997 + $0x68] sm:$0xff]
  %v2012 = vld [vmem:[%s1997 + $0x70] sm:$0xff]
  %v2013 = vld [vmem:[%s1997 + $0x78] sm:$0xff]
  %2014 = vmatprep.subr.mxu0 0.0
  %2015 = vmatpush1.msra.mxu0 0.0
  %2016 = vmatprep.subr.mxu0 0.0
  %2017 = vmatpush1.msra.mxu0 0.0
  %2018 = vmatprep.subr.mxu0 0.0
  %2019 = vmatpush1.msra.mxu0 0.0
  %2020 = vmatprep.subr.mxu0 0.0
  %2021 = vmatpush1.msra.mxu0 0.0
  %2022 = vmatprep.subr.mxu0 0.0
  %2023 = vmatpush1.msra.mxu0 0.0
  %2024 = vmatprep.subr.mxu0 0.0
  %2025 = vmatpush1.msra.mxu0 0.0
  %2026 = vmatprep.subr.mxu0 0.0
  %2027 = vmatpush1.msra.mxu0 0.0
  %2028 = vmatprep.subr.mxu0 0.0
  %2029 = vmatpush1.msra.mxu0 0.0
  %2030 = vmatprep.subr.mxu0 0.0
  %2031 = vmatpush1.msra.mxu0 0.0
  %2032 = vmatprep.subr.mxu0 0.0
  %2033 = vmatpush1.msra.mxu0 0.0
  %2034 = vmatprep.subr.mxu0 0.0
  %2035 = vmatpush1.msra.mxu0 0.0
  %2036 = vmatprep.subr.mxu0 0.0
  %2037 = vmatpush1.msra.mxu0 0.0
  %2038 = vmatprep.subr.mxu0 0.0
  %2039 = vmatpush1.msra.mxu0 %v1996
  %2040 = vmatprep.subr.mxu0 0.0
  %2041 = vmatpush1.msra.mxu0 %v1995
  %2042 = vmatprep.subr.mxu0 0.0
  %2043 = vmatpush1.msra.mxu0 %v1994
  %2044 = vmatprep.subr.mxu0 0.0
  %2045 = vmatpush1.msra.mxu0 %v1993
  %2046 = vmatprep.subr.mxu0 0.0
  %2047 = vmatpush2.msra.mxu0 0.0
  %2048 = vmatprep.subr.mxu0 0.0
  %2049 = vmatpush2.msra.mxu0 0.0
  %2050 = vmatprep.subr.mxu0 0.0
  %2051 = vmatpush2.msra.mxu0 0.0
  %2052 = vmatprep.subr.mxu0 0.0
  %2053 = vmatpush2.msra.mxu0 0.0
  %2054 = vmatprep.subr.mxu0 0.0
  %2055 = vmatpush2.msra.mxu0 0.0
  %2056 = vmatprep.subr.mxu0 0.0
  %2057 = vmatpush2.msra.mxu0 0.0
  %2058 = vmatprep.subr.mxu0 0.0
  %2059 = vmatpush2.msra.mxu0 0.0
  %2060 = vmatprep.subr.mxu0 0.0
  %2061 = vmatpush2.msra.mxu0 0.0
  %2062 = vmatprep.subr.mxu0 0.0
  %2063 = vmatpush2.msra.mxu0 0.0
  %2064 = vmatprep.subr.mxu0 0.0
  %2065 = vmatpush2.msra.mxu0 0.0
  %2066 = vmatprep.subr.mxu0 0.0
  %2067 = vmatpush2.msra.mxu0 0.0
  %2068 = vmatprep.subr.mxu0 0.0
  %2069 = vmatpush2.msra.mxu0 0.0
  %2070 = vmatprep.subr.mxu0 0.0
  %2071 = vmatpush2.msra.mxu0 0.0
  %2072 = vmatprep.subr.mxu0 0.0
  %2073 = vmatpush2.msra.mxu0 0.0
  %2074 = vmatprep.subr.mxu0 0.0
  %2075 = vmatpush2.msra.mxu0 0.0
  %2076 = vmatprep.subr.mxu0 0.0
  %2077 = vmatpush2.msra.mxu0 0.0
  %2078 = vmatprep.mubr.f32.mxu0 0.0
  %2079 = vmatmul.mubr.f32.gmra.mxu0 %v49
  %v2080 = vpop.f32.mrf.mxu0
  %v2081 = vadd.f32 0.0, %v2080
  %v2082 = vpop.f32.mrf.mxu0
  %2083 = vmatprep.mubr.f32.mxu0 0.0
  %2084 = vmatmul.mubr.f32.gmra.mxu0 %v52
  %v2085 = vpop.f32.mrf.mxu0
  %v2086 = vadd.f32 0.0, %v2085
  %v2087 = vpop.f32.mrf.mxu0
  %2088 = vmatprep.mubr.f32.mxu0 0.0
  %2089 = vmatmul.mubr.f32.gmra.mxu0 %v55
  %v2090 = vpop.f32.mrf.mxu0
  %v2091 = vadd.f32 0.0, %v2090
  %v2092 = vpop.f32.mrf.mxu0
  %2093 = vmatprep.mubr.f32.mxu0 0.0
  %2094 = vmatmul.mubr.f32.gmra.mxu0 %v58
  %v2095 = vpop.f32.mrf.mxu0
  %v2096 = vadd.f32 0.0, %v2095
  %v2097 = vpop.f32.mrf.mxu0
  %2098 = vmatprep.mubr.f32.mxu0 0.0
  %2099 = vmatmul.mubr.f32.gmra.mxu0 %v61
  %v2100 = vpop.f32.mrf.mxu0
  %v2101 = vadd.f32 0.0, %v2100
  %v2102 = vpop.f32.mrf.mxu0
  %2103 = vmatprep.mubr.f32.mxu0 0.0
  %2104 = vmatmul.mubr.f32.gmra.mxu0 %v64
  %v2105 = vpop.f32.mrf.mxu0
  %v2106 = vadd.f32 0.0, %v2105
  %v2107 = vpop.f32.mrf.mxu0
  %2108 = vmatprep.mubr.f32.mxu0 0.0
  %2109 = vmatmul.mubr.f32.gmra.mxu0 %v67
  %v2110 = vpop.f32.mrf.mxu0
  %v2111 = vadd.f32 0.0, %v2110
  %v2112 = vpop.f32.mrf.mxu0
  %2113 = vmatprep.mubr.f32.mxu0 0.0
  %2114 = vmatmul.mubr.f32.gmra.mxu0 %v70
  %v2115 = vpop.f32.mrf.mxu0
  %v2116 = vadd.f32 0.0, %v2115
  %v2117 = vpop.f32.mrf.mxu0
  %2118 = vmatprep.mubr.f32.mxu0 0.0
  %2119 = vmatmul.mubr.f32.gmra.mxu0 %v73
  %v2120 = vpop.f32.mrf.mxu0
  %v2121 = vadd.f32 0.0, %v2120
  %v2122 = vpop.f32.mrf.mxu0
  %2123 = vmatprep.mubr.f32.mxu0 0.0
  %2124 = vmatmul.mubr.f32.gmra.mxu0 %v76
  %v2125 = vpop.f32.mrf.mxu0
  %v2126 = vadd.f32 0.0, %v2125
  %v2127 = vpop.f32.mrf.mxu0
  %2128 = vmatprep.mubr.f32.mxu0 0.0
  %2129 = vmatmul.mubr.f32.gmra.mxu0 %v79
  %v2130 = vpop.f32.mrf.mxu0
  %v2131 = vadd.f32 0.0, %v2130
  %v2132 = vpop.f32.mrf.mxu0
  %2133 = vmatprep.mubr.f32.mxu0 0.0
  %2134 = vmatmul.mubr.f32.gmra.mxu0 %v82
  %v2135 = vpop.f32.mrf.mxu0
  %v2136 = vadd.f32 0.0, %v2135
  %v2137 = vpop.f32.mrf.mxu0
  %2138 = vmatprep.mubr.f32.mxu0 0.0
  %2139 = vmatmul.mubr.f32.gmra.mxu0 %v85
  %v2140 = vpop.f32.mrf.mxu0
  %v2141 = vadd.f32 0.0, %v2140
  %v2142 = vpop.f32.mrf.mxu0
  %2143 = vmatprep.mubr.f32.mxu0 0.0
  %2144 = vmatmul.mubr.f32.gmra.mxu0 %v88
  %v2145 = vpop.f32.mrf.mxu0
  %v2146 = vadd.f32 0.0, %v2145
  %v2147 = vpop.f32.mrf.mxu0
  %2148 = vmatprep.mubr.f32.mxu0 0.0
  %2149 = vmatmul.mubr.f32.gmra.mxu0 %v91
  %v2150 = vpop.f32.mrf.mxu0
  %v2151 = vadd.f32 0.0, %v2150
  %v2152 = vpop.f32.mrf.mxu0
  %2153 = vmatprep.mubr.f32.mxu0 0.0
  %2154 = vmatmul.mubr.f32.gmra.mxu0 %v94
  %v2155 = vpop.f32.mrf.mxu0
  %v2156 = vadd.f32 0.0, %v2155
  %v2157 = vpop.f32.mrf.mxu0
  %2158 = vdwg.mxu0
  %v2159 = vadd.f32 %v1998, %v2081
  %v2160 = vadd.f32 %v1999, %v2086
  %v2161 = vadd.f32 %v2000, %v2091
  %v2162 = vadd.f32 %v2001, %v2096
  %v2163 = vadd.f32 %v2002, %v2101
  %v2164 = vadd.f32 %v2003, %v2106
  %v2165 = vadd.f32 %v2004, %v2111
  %v2166 = vadd.f32 %v2005, %v2116
  %v2167 = vadd.f32 %v2006, %v2121
  %v2168 = vadd.f32 %v2007, %v2126
  %v2169 = vadd.f32 %v2008, %v2131
  %v2170 = vadd.f32 %v2009, %v2136
  %v2171 = vadd.f32 %v2010, %v2141
  %v2172 = vadd.f32 %v2011, %v2146
  %v2173 = vadd.f32 %v2012, %v2151
  %v2174 = vadd.f32 %v2013, %v2156
  %v2175 = vxor.u32 %v2159, 2147483648
  %v2176 = vxor.u32 %v2160, 2147483648
  %v2177 = vxor.u32 %v2161, 2147483648
  %v2178 = vxor.u32 %v2162, 2147483648
  %v2179 = vxor.u32 %v2163, 2147483648
  %v2180 = vxor.u32 %v2164, 2147483648
  %v2181 = vxor.u32 %v2165, 2147483648
  %v2182 = vxor.u32 %v2166, 2147483648
  %v2183 = vxor.u32 %v2167, 2147483648
  %v2184 = vxor.u32 %v2168, 2147483648
  %v2185 = vxor.u32 %v2169, 2147483648
  %v2186 = vxor.u32 %v2170, 2147483648
  %v2187 = vmul.f32 %v2175, 1.442695
  %v2188 = vpow.pop %v2187
  %v2189 = vmul.f32 %v2176, 1.442695
  %v2190 = vpow.pop %v2189
  %v2191 = vmul.f32 %v2177, 1.442695
  %v2192 = vpow.pop %v2191
  %v2193 = vmul.f32 %v2178, 1.442695
  %v2194 = vpow.pop %v2193
  %v2195 = vmul.f32 %v2179, 1.442695
  %v2196 = vpow.pop %v2195
  %v2197 = vmul.f32 %v2180, 1.442695
  %v2198 = vpow.pop %v2197
  %v2199 = vmul.f32 %v2181, 1.442695
  %v2200 = vpow.pop %v2199
  %v2201 = vmul.f32 %v2182, 1.442695
  %v2202 = vpow.pop %v2201
  %v2203 = vmul.f32 %v2183, 1.442695
  %v2204 = vpow.pop %v2203
  %v2205 = vmul.f32 %v2184, 1.442695
  %v2206 = vpow.pop %v2205
  %v2207 = vmul.f32 %v2185, 1.442695
  %v2208 = vpow.pop %v2207
  %v2209 = vmul.f32 %v2186, 1.442695
  %v2210 = vpow.pop %v2209
  %v2211 = vadd.f32 %v2188, 1.0
  %v2212 = vadd.f32 %v2190, 1.0
  %v2213 = vadd.f32 %v2192, 1.0
  %v2214 = vadd.f32 %v2194, 1.0
  %v2215 = vadd.f32 %v2196, 1.0
  %v2216 = vadd.f32 %v2198, 1.0
  %v2217 = vadd.f32 %v2200, 1.0
  %v2218 = vadd.f32 %v2202, 1.0
  %v2219 = vadd.f32 %v2204, 1.0
  %v2220 = vadd.f32 %v2206, 1.0
  %v2221 = vadd.f32 %v2208, 1.0
  %v2222 = vadd.f32 %v2210, 1.0
  %v2223 = vrcp.pop %v2211
  %v2224 = vmul.f32 1.0, %v2223
  %v2225 = vrcp.pop %v2212
  %v2226 = vmul.f32 1.0, %v2225
  %v2227 = vrcp.pop %v2213
  %v2228 = vmul.f32 1.0, %v2227
  %v2229 = vrcp.pop %v2214
  %v2230 = vmul.f32 1.0, %v2229
  %v2231 = vrcp.pop %v2215
  %v2232 = vmul.f32 1.0, %v2231
  %v2233 = vrcp.pop %v2216
  %v2234 = vmul.f32 1.0, %v2233
  %v2235 = vrcp.pop %v2217
  %v2236 = vmul.f32 1.0, %v2235
  %v2237 = vrcp.pop %v2218
  %v2238 = vmul.f32 1.0, %v2237
  %v2239 = vrcp.pop %v2219
  %v2240 = vmul.f32 1.0, %v2239
  %v2241 = vrcp.pop %v2220
  %v2242 = vmul.f32 1.0, %v2241
  %v2243 = vrcp.pop %v2221
  %v2244 = vmul.f32 1.0, %v2243
  %v2245 = vrcp.pop %v2222
  %v2246 = vmul.f32 1.0, %v2245
  %v2247 = vtanh.pop %v2171
  %v2248 = vtanh.pop %v2172
  %v2249 = vtanh.pop %v2173
  %v2250 = vtanh.pop %v2174
  %v2251 = vmul.f32 %v2247, %v2224
  %v2252 = vmul.f32 %v2248, %v2226
  %v2253 = vmul.f32 %v2249, %v2228
  %v2254 = vmul.f32 %v2250, %v2230
  %v2255 = vmul.f32 %v1985, %v2232
  %v2256 = vmul.f32 %v1986, %v2234
  %v2257 = vmul.f32 %v1987, %v2236
  %v2258 = vmul.f32 %v1988, %v2238
  %v2259 = vadd.f32 %v2251, %v2255
  %v2260 = vadd.f32 %v2252, %v2256
  %v2261 = vadd.f32 %v2253, %v2257
  %v2262 = vadd.f32 %v2254, %v2258
  %v2263 = vtanh.pop %v2259
  %v2264 = vtanh.pop %v2260
  %v2265 = vtanh.pop %v2261
  %v2266 = vtanh.pop %v2262
  %v2267 = vmul.f32 %v2263, %v2240
  %v2268 = vmul.f32 %v2264, %v2242
  %v2269 = vmul.f32 %v2265, %v2244
  %v2270 = vmul.f32 %v2266, %v2246
  %v2272 = vsel %vm47, %v27, 0
  %v2275 = vsel %vm47, %v28, 0
  %2277 = vmatprep.subr.mxu0 0.0
  %2278 = vmatpush1.msra.mxu0 0.0
  %2279 = vmatprep.subr.mxu0 0.0
  %2280 = vmatpush1.msra.mxu0 0.0
  %2281 = vmatprep.subr.mxu0 0.0
  %2282 = vmatpush1.msra.mxu0 0.0
  %2283 = vmatprep.subr.mxu0 0.0
  %2284 = vmatpush1.msra.mxu0 0.0
  %2285 = vmatprep.subr.mxu0 0.0
  %2286 = vmatpush1.msra.mxu0 0.0
  %2287 = vmatprep.subr.mxu0 0.0
  %2288 = vmatpush1.msra.mxu0 0.0
  %2289 = vmatprep.subr.mxu0 0.0
  %2290 = vmatpush1.msra.mxu0 0.0
  %2291 = vmatprep.subr.mxu0 0.0
  %2292 = vmatpush1.msra.mxu0 0.0
  %2293 = vmatprep.subr.mxu0 0.0
  %2294 = vmatpush1.msra.mxu0 0.0
  %2295 = vmatprep.subr.mxu0 0.0
  %2296 = vmatpush1.msra.mxu0 0.0
  %2297 = vmatprep.subr.mxu0 0.0
  %2298 = vmatpush1.msra.mxu0 0.0
  %2299 = vmatprep.subr.mxu0 0.0
  %2300 = vmatpush1.msra.mxu0 0.0
  %2301 = vmatprep.subr.mxu0 0.0
  %2302 = vmatpush1.msra.mxu0 %v2270
  %2303 = vmatprep.subr.mxu0 0.0
  %2304 = vmatpush1.msra.mxu0 %v2269
  %2305 = vmatprep.subr.mxu0 0.0
  %2306 = vmatpush1.msra.mxu0 %v2268
  %2307 = vmatprep.subr.mxu0 0.0
  %2308 = vmatpush1.msra.mxu0 %v2267
  %2309 = vmatprep.subr.mxu0 0.0
  %2310 = vmatpush2.msra.mxu0 0.0
  %2311 = vmatprep.subr.mxu0 0.0
  %2312 = vmatpush2.msra.mxu0 0.0
  %2313 = vmatprep.subr.mxu0 0.0
  %2314 = vmatpush2.msra.mxu0 0.0
  %2315 = vmatprep.subr.mxu0 0.0
  %2316 = vmatpush2.msra.mxu0 0.0
  %2317 = vmatprep.subr.mxu0 0.0
  %2318 = vmatpush2.msra.mxu0 0.0
  %2319 = vmatprep.subr.mxu0 0.0
  %2320 = vmatpush2.msra.mxu0 0.0
  %2321 = vmatprep.subr.mxu0 0.0
  %2322 = vmatpush2.msra.mxu0 0.0
  %2323 = vmatprep.subr.mxu0 0.0
  %2324 = vmatpush2.msra.mxu0 0.0
  %2325 = vmatprep.subr.mxu0 0.0
  %2326 = vmatpush2.msra.mxu0 0.0
  %2327 = vmatprep.subr.mxu0 0.0
  %2328 = vmatpush2.msra.mxu0 0.0
  %2329 = vmatprep.subr.mxu0 0.0
  %2330 = vmatpush2.msra.mxu0 0.0
  %2331 = vmatprep.subr.mxu0 0.0
  %2332 = vmatpush2.msra.mxu0 0.0
  %2333 = vmatprep.subr.mxu0 0.0
  %2334 = vmatpush2.msra.mxu0 0.0
  %2335 = vmatprep.subr.mxu0 0.0
  %2336 = vmatpush2.msra.mxu0 0.0
  %2337 = vmatprep.subr.mxu0 0.0
  %2338 = vmatpush2.msra.mxu0 0.0
  %2339 = vmatprep.subr.mxu0 0.0
  %2340 = vmatpush2.msra.mxu0 0.0
  %2341 = vmatprep.mubr.f32.mxu0 0.0
  %2342 = vmatmul.mubr.f32.gmra.mxu0 %v2272
  %v2343 = vpop.f32.mrf.mxu0
  %v2344 = vadd.f32 %v29, %v2343
  %v2345 = vpop.f32.mrf.mxu0
  %2346 = vmatprep.mubr.f32.mxu0 0.0
  %2347 = vmatmul.mubr.f32.gmra.mxu0 %v2275
  %v2348 = vpop.f32.mrf.mxu0
  %v2349 = vadd.f32 %v30, %v2348
  %v2350 = vpop.f32.mrf.mxu0
  %2351 = vdwg.mxu0
  %v2352 = vsel %vm47, %v2344, -inf
  %v2353 = vsel %vm47, %v2349, -inf
  %v2354 = vmax.f32 %v2352, %v2353
  %v2355 = vrot.slane %v2354, 4
  %v2356 = vmax.f32 %v2354, %v2355
  %v2357 = vrot.slane %v2356, 2
  %v2358 = vmax.f32 %v2356, %v2357
  %v2359 = vrot.slane %v2358, 1
  %v2360 = vmax.f32 %v2358, %v2359
  %v2361 = vsub.f32 %v2344, %v2360
  %v2362 = vsub.f32 %v2349, %v2360
  %v2363 = vmul.f32 %v2361, 1.442695
  %v2364 = vpow.pop %v2363
  %v2365 = vmul.f32 %v2362, 1.442695
  %v2366 = vpow.pop %v2365
  %v2367 = vsel %vm47, %v2364, 0.0
  %v2368 = vsel %vm47, %v2366, 0.0
  %v2369 = vadd.f32 %v2367, %v2368
  %v2370 = vrot.slane %v2369, 4
  %v2371 = vadd.f32 %v2369, %v2370
  %v2372 = vrot.slane %v2371, 2
  %v2373 = vadd.f32 %v2371, %v2372
  %v2374 = vrot.slane %v2373, 1
  %v2375 = vadd.f32 %v2373, %v2374
  %v2376 = vlog2.pop %v2375
  %v2377 = vmul.f32 %v2376, 0.6931472
  %v2378 = vadd.f32 %v2377, %v2360
  %v2379 = vsub.f32 %v2344, %v2378
  %v2380 = vsub.f32 %v2349, %v2378
  %2381 = vst.msk [vmem:[%s2] sm:$0xff] %vm47, %v2379
  %2382 = vst.msk [vmem:[%s2 + $0x8] sm:$0xff] %vm47, %v2380
  // Predicated region
  $region10: #{lstm_forward.1} parent=0 // pred_check
    _
  $region11: #{lstm_forward.1} parent=0 // pred_check_branch
    %2384 = sbr.rel (0) target = $region13
  $region12: #{lstm_forward.1} parent=0 // pred_region
    _
  $region13: #{lstm_forward.1} parent=0 // pred_fallthru
    _
  // Predicated region
  $region14: #{lstm_forward.1} parent=0 // pred_check
    _
  $region15: #{lstm_forward.1} parent=0 // pred_check_branch
    %2386 = sbr.rel (0) target = $region17
  $region16: #{lstm_forward.1} parent=0 // pred_region
    _
  $region17: #{lstm_forward.1} parent=0 // pred_fallthru
    _

</llo_original>
